<compile_context>
chip_gen: v6e
topology: v6e:2x2x1
jax: 0.10.0
libtpu: 0.0.40
codegen_flags: <defaults>
</compile_context>

<pallas_src>
import functools
import math

import jax
import jax.numpy as jnp
import numpy as np
from jax import lax
from jax.experimental import pallas as pl
from jax.experimental.pallas import tpu as pltpu

EPS = 1e-5          # nn.LayerNorm default eps
N_EMBED = 64
N_HID = 128
N_HEAD = 4
HEAD_DIM = N_EMBED // N_HEAD
N_ENCO = 32
D_IN = 208
SEQ_LEN = 2         # forced by decoder Linear(128): SEQ_LEN * N_EMBED == 128
D_OUT = 9
D_OUT_PAD = 128     # lane-dense padded output width

# ---- packed-operand layout ------------------------------------------------
# w64_pack  [64, 640]  (all K=64 matrices; lane-slot starts are mult. of 128)
W64_QKV, W64_WO, W64_WF1, W64_MSUM = 0, 256, 384, 512
# w128_pack [128, 512] (all K=128 matrices)
W128_WF2, W128_DW1, W128_DW3 = 0, 128, 384
# ec_pack   [240, 64]  rows [0:208)=ec_w1 (cols :32), rows [208:240)=ec_w2
# vec_pack  [19, 256]  one [1,N] parameter vector per row (lanes [0:N))
(V_ECG1, V_ECB1, V_SRCG, V_SRCB, V_BQKV, V_BO, V_LN1G, V_LN1B, V_BF1, V_BF2,
 V_LN2G, V_LN2B, V_DB1, V_DG1, V_DBB1, V_DB2, V_DG2, V_DBB2, V_DB3) = range(19)


def _ln(x, g, b):
    m = jnp.mean(x, axis=-1, keepdims=True)
    v = jnp.mean((x - m) ** 2, axis=-1, keepdims=True)
    return (x - m) * lax.rsqrt(v + EPS) * g + b


# --------------------------------------------------------------------------
# Single fused kernel: encoder_c + encoder_src + TransformerEncoderLayer
# (post-norm, ReLU FFN, no dropout) + decoder MLP head.
# --------------------------------------------------------------------------
def fused_model_kernel(x_ref, ec_ref, w64_ref, w128_ref, dw2_ref, vec_ref,
                       o_ref, *, seq_len, batch_size, n_head, head_dim):
    e = n_head * head_dim               # 64
    nt = seq_len * batch_size           # number of tokens (rows), seq-major
    f32 = jnp.float32

    def vec(row, width):                # [1, width] parameter vector
        return vec_ref[row:row + 1, 0:width]

    def mm(a, b):
        return jnp.dot(a, b, preferred_element_type=f32)

    # ---- encoder_c + encoder_src (position-wise on the [S*B, 208] tokens) --
    x = x_ref[...]                                                    # [nt,208]
    h = jnp.maximum(mm(x, ec_ref[0:208, 0:N_ENCO]), 0.0)
    h = _ln(h, vec(V_ECG1, N_ENCO), vec(V_ECB1, N_ENCO))              # [nt, 32]
    src = _ln(mm(h, ec_ref[208:240, 0:e]),
              vec(V_SRCG, e), vec(V_SRCB, e))                         # [nt, 64]

    # ---- fused QKV projection (one MXU push) -------------------------------
    qkv = mm(src, w64_ref[:, W64_QKV:W64_QKV + 3 * e]) + vec(V_BQKV, 3 * e)
    q = qkv[:, 0:e] * (1.0 / math.sqrt(head_dim))
    k = qkv[:, e:2 * e]
    v = qkv[:, 2 * e:3 * e]

    # per-head lane-sum matrix (precomputed on host, shipped in w64_pack)
    msum = w64_ref[:, W64_MSUM:W64_MSUM + e]                          # [64,64]

    # ---- attention (seq_len == 2 structurally) ------------------------------
    # Row i's sequence partner is row (i + B) mod nt; fetch it with one tiny
    # permutation matmul, keep everything at full [nt,64] row occupancy.
    r = lax.broadcasted_iota(jnp.int32, (nt, nt), 0)
    c = lax.broadcasted_iota(jnp.int32, (nt, nt), 1)
    perm = jnp.where((c == r + batch_size) |
                     (c == r - (nt - batch_size)), 1.0, 0.0)          # [nt,nt]
    k_oth = mm(perm, k)
    v_oth = mm(perm, v)

    s_same = mm(q * k, msum)            # per-head <q_i,k_i> broadcast to lanes
    s_oth = mm(q * k_oth, msum)         # per-head <q_i,k_other(i)>
    m = jnp.maximum(s_same, s_oth)
    e_s = jnp.exp(s_same - m)
    e_o = jnp.exp(s_oth - m)
    attn = (e_s * v + e_o * v_oth) * pl.reciprocal(e_s + e_o, approx=True)
    attn = mm(attn, w64_ref[:, W64_WO:W64_WO + e]) + vec(V_BO, e)     # [nt, 64]

    # ---- post-norm residual + FFN -------------------------------------------
    x1 = _ln(src + attn, vec(V_LN1G, e), vec(V_LN1B, e))
    ff = jnp.maximum(mm(x1, w64_ref[:, W64_WF1:W64_WF1 + N_HID])
                     + vec(V_BF1, N_HID), 0.0)
    ff = mm(ff, w128_ref[:, W128_WF2:W128_WF2 + e]) + vec(V_BF2, e)
    mem = _ln(x1 + ff, vec(V_LN2G, e), vec(V_LN2B, e))                # [nt, 64]

    # ---- PyTorch mem.reshape(batch_size, -1) @ dw1, relayout-free -----------
    # flat row r = [mem[2r] | mem[2r+1]]  =>  flat @ dw1 =
    #   (sel_even @ mem) @ dw1[:64] + (sel_odd @ mem) @ dw1[64:]
    rr = lax.broadcasted_iota(jnp.int32, (batch_size, nt), 0)
    cc = lax.broadcasted_iota(jnp.int32, (batch_size, nt), 1)
    sel_lo = jnp.where(cc == 2 * rr, 1.0, 0.0)          # tokens 0,2,...
    sel_hi = jnp.where(cc == 2 * rr + 1, 1.0, 0.0)      # tokens 1,3,...
    f_lo = mm(sel_lo, mem)                              # flat[:, :64]
    f_hi = mm(sel_hi, mem)                              # flat[:, 64:]

    hd = (mm(f_lo, w128_ref[0:e, W128_DW1:W128_DW1 + 256])
          + mm(f_hi, w128_ref[e:2 * e, W128_DW1:W128_DW1 + 256])
          + vec(V_DB1, 256))
    hd = jnp.maximum(_ln(hd, vec(V_DG1, 256), vec(V_DBB1, 256)), 0.0)  # [B,256]
    hd = mm(hd, dw2_ref[...]) + vec(V_DB2, 128)
    hd = jnp.maximum(_ln(hd, vec(V_DG2, 128), vec(V_DBB2, 128)), 0.0)  # [B,128]
    hd = mm(hd, w128_ref[:, W128_DW3:W128_DW3 + D_OUT_PAD]) + vec(V_DB3, D_OUT_PAD)
    o_ref[...] = jnp.tanh(hd)           # [B, 128]; lanes >= 9 are tanh(0) == 0


# --------------------------------------------------------------------------
# One-time host-side packing of the parameters into 5 dense operands.
# --------------------------------------------------------------------------
def pack_params(p):
    def padlane(a, w):
        a = jnp.asarray(a, jnp.float32)
        return jnp.pad(a, ((0, 0), (0, w - a.shape[1])))

    ec_pack = jnp.concatenate([padlane(p["ec_w1"], 64), p["ec_w2"]], axis=0)

    msum = np.kron(np.eye(N_HEAD), np.ones((HEAD_DIM, HEAD_DIM))).astype(np.float32)
    w64_pack = jnp.concatenate([
        padlane(p["wqkv"], 256),        # lanes [0:256), data [0:192)
        padlane(p["wo"], 128),          # lanes [256:384), data [256:320)
        p["wf1"],                       # lanes [384:512)
        padlane(jnp.asarray(msum), 128) # lanes [512:640), data [512:576)
    ], axis=1)

    dw3p = jnp.pad(p["dw3"], ((0, 0), (0, D_OUT_PAD - D_OUT)))
    w128_pack = jnp.concatenate([
        padlane(p["wf2"], 128),         # lanes [0:128), data [0:64)
        p["dw1"],                       # lanes [128:384)
        dw3p,                           # lanes [384:512)
    ], axis=1)

    vec_rows = [p["ec_g1"], p["ec_b1"], p["src_g"], p["src_b"], p["bqkv"],
                p["bo"], p["ln1_g"], p["ln1_b"], p["bf1"], p["bf2"],
                p["ln2_g"], p["ln2_b"], p["db1"], p["dg1"], p["dbb1"],
                p["db2"], p["dg2"], p["dbb2"], p["db3"]]
    vec_pack = jnp.concatenate([padlane(r, 256) for r in vec_rows], axis=0)

    return {"ec": ec_pack, "w64": w64_pack, "w128": w128_pack,
            "dw2": jnp.asarray(p["dw2"], jnp.float32), "vec": vec_pack}


# --------------------------------------------------------------------------
# Full model forward: one fused, grid-less pallas_call (everything in VMEM).
# --------------------------------------------------------------------------
@functools.partial(jax.jit, static_argnums=(3,))
def model_forward(packed, sensor_pos, vols, batch_size):
    del sensor_pos  # unused by the PyTorch forward as well
    s, b, d_in = vols.shape
    assert d_in == D_IN
    assert b == batch_size
    # decoder Linear(128) requires seq_len * n_embed == 128  =>  seq_len == 2
    assert s == SEQ_LEN and s * N_EMBED == 128

    x_flat = vols.reshape(s * b, d_in)          # [S*B, 208], seq-major tokens

    vmem = pl.BlockSpec(memory_space=pltpu.MemorySpace.VMEM)
    kern = functools.partial(fused_model_kernel,
                             seq_len=s, batch_size=batch_size,
                             n_head=N_HEAD, head_dim=HEAD_DIM)
    cost = pl.CostEstimate(flops=800_000, transcendentals=1_500,
                           bytes_accessed=620_000)
    out = pl.pallas_call(
        kern,
        out_shape=jax.ShapeDtypeStruct((batch_size, D_OUT_PAD), jnp.float32),
        in_specs=[vmem] * 6,
        out_specs=vmem,
        cost_estimate=cost,
    )(x_flat, packed["ec"], packed["w64"], packed["w128"],
      packed["dw2"], packed["vec"])
    return out[:, :D_OUT].reshape(-1, 3, 3)


# --------------------------------------------------------------------------
# Pure-JAX reference (same math, no Pallas) for verification
# --------------------------------------------------------------------------
def reference_forward(p, vols, batch_size):
    s, b, d_in = vols.shape
    hd = HEAD_DIM
    x = vols.reshape(s * b, d_in)
    h = jnp.maximum(x @ p["ec_w1"], 0.0)
    h = _ln(h, p["ec_g1"], p["ec_b1"])
    src = _ln(h @ p["ec_w2"], p["src_g"], p["src_b"])          # [S*B, 64]
    wq = p["wqkv"][:, :N_EMBED]
    wk = p["wqkv"][:, N_EMBED:2 * N_EMBED]
    wv = p["wqkv"][:, 2 * N_EMBED:]
    bq = p["bqkv"][:, :N_EMBED]
    bk = p["bqkv"][:, N_EMBED:2 * N_EMBED]
    bv = p["bqkv"][:, 2 * N_EMBED:]
    q = (src @ wq + bq) / math.sqrt(hd)
    k = src @ wk + bk
    v = src @ wv + bv
    q = q.reshape(s, b, N_HEAD, hd)
    k = k.reshape(s, b, N_HEAD, hd)
    v = v.reshape(s, b, N_HEAD, hd)
    sc = jnp.einsum("ibhd,jbhd->bhij", q, k)
    a = jax.nn.softmax(sc, axis=-1)
    o = jnp.einsum("bhij,jbhd->ibhd", a, v).reshape(s * b, N_EMBED)
    attn = o @ p["wo"] + p["bo"]
    x1 = _ln(src + attn, p["ln1_g"], p["ln1_b"])
    ff = jnp.maximum(x1 @ p["wf1"] + p["bf1"], 0.0) @ p["wf2"] + p["bf2"]
    mem = _ln(x1 + ff, p["ln2_g"], p["ln2_b"]).reshape(s, b, N_EMBED)
    flat = mem.reshape(batch_size, -1)
    h = jnp.maximum(_ln(flat @ p["dw1"] + p["db1"], p["dg1"], p["dbb1"]), 0.0)
    h = jnp.maximum(_ln(h @ p["dw2"] + p["db2"], p["dg2"], p["dbb2"]), 0.0)
    out = jnp.tanh(h @ p["dw3"] + p["db3"])
    return out.reshape(-1, 3, 3)


# --------------------------------------------------------------------------
# Deterministic parameter init (xavier-uniform weights, small-uniform biases,
# LayerNorm weight=1 / bias=0)
# --------------------------------------------------------------------------
def init_params(key):
    def xavier(k, shape):
        fan_in, fan_out = shape
        lim = math.sqrt(6.0 / (fan_in + fan_out))
        return jax.random.uniform(k, shape, jnp.float32, -lim, lim)

    def small(k, shape):
        return jax.random.uniform(k, shape, jnp.float32, -0.05, 0.05)

    ks = jax.random.split(key, 24)
    p = {}
    # encoder_c + encoder_src
    p["ec_w1"] = xavier(ks[0], (D_IN, N_ENCO))
    p["ec_g1"] = jnp.ones((1, N_ENCO)); p["ec_b1"] = jnp.zeros((1, N_ENCO))
    p["ec_w2"] = xavier(ks[1], (N_ENCO, N_EMBED))
    p["src_g"] = jnp.ones((1, N_EMBED)); p["src_b"] = jnp.zeros((1, N_EMBED))
    # transformer encoder layer (weights stored [in, out]); fused QKV
    p["wqkv"] = jnp.concatenate([xavier(ks[2], (N_EMBED, N_EMBED)),
                                 xavier(ks[3], (N_EMBED, N_EMBED)),
                                 xavier(ks[4], (N_EMBED, N_EMBED))], axis=1)
    p["bqkv"] = jnp.concatenate([small(ks[5], (1, N_EMBED)),
                                 small(ks[6], (1, N_EMBED)),
                                 small(ks[7], (1, N_EMBED))], axis=1)
    p["wo"] = xavier(ks[8], (N_EMBED, N_EMBED)); p["bo"] = small(ks[9], (1, N_EMBED))
    p["ln1_g"] = jnp.ones((1, N_EMBED)); p["ln1_b"] = jnp.zeros((1, N_EMBED))
    p["wf1"] = xavier(ks[10], (N_EMBED, N_HID)); p["bf1"] = small(ks[11], (1, N_HID))
    p["wf2"] = xavier(ks[12], (N_HID, N_EMBED)); p["bf2"] = small(ks[13], (1, N_EMBED))
    p["ln2_g"] = jnp.ones((1, N_EMBED)); p["ln2_b"] = jnp.zeros((1, N_EMBED))
    # decoder head
    p["dw1"] = xavier(ks[14], (128, 256)); p["db1"] = small(ks[15], (1, 256))
    p["dg1"] = jnp.ones((1, 256)); p["dbb1"] = jnp.zeros((1, 256))
    p["dw2"] = xavier(ks[16], (256, 128)); p["db2"] = small(ks[17], (1, 128))
    p["dg2"] = jnp.ones((1, 128)); p["dbb2"] = jnp.zeros((1, 128))
    p["dw3"] = xavier(ks[18], (128, 9)); p["db3"] = small(ks[19], (1, 9))
    return p


if __name__ == "__main__":
    key = jax.random.PRNGKey(0)
    k_par, k_vols, k_sensor = jax.random.split(key, 3)

    batch_size = 2
    seq_len = SEQ_LEN   # S*n_embed must equal 128 for the decoder's Linear(128, ...)
    params = init_params(k_par)
    packed = pack_params(params)          # packed ONCE, reused every call

    vols = jax.random.normal(k_vols, (seq_len, batch_size, D_IN), jnp.float32)
    sensor_pos = jax.random.normal(k_sensor, (batch_size, 3, 3), jnp.float32)

    out = model_forward(packed, sensor_pos, vols, batch_size)
    out = jax.block_until_ready(out)

    ref = jax.block_until_ready(reference_forward(params, vols, batch_size))

    assert out.shape == (batch_size, 3, 3), out.shape
    assert bool(jnp.all(jnp.isfinite(out)))
    np.testing.assert_allclose(np.asarray(out), np.asarray(ref),
                               rtol=2e-2, atol=2e-2)
    print("KERNEL_OK")
</pallas_src>

<mosaic_0001>
module attributes {stable_mosaic.version = 11 : i64} {
  func.func @fused_model_kernel(%arg0: memref<4x208xf32, #tpu.memory_space<vmem>>, %arg1: memref<240x64xf32, #tpu.memory_space<vmem>>, %arg2: memref<64x640xf32, #tpu.memory_space<vmem>>, %arg3: memref<128x512xf32, #tpu.memory_space<vmem>>, %arg4: memref<256x128xf32, #tpu.memory_space<vmem>>, %arg5: memref<19x256xf32, #tpu.memory_space<vmem>>, %arg6: memref<2x128xf32, #tpu.memory_space<vmem>>) attributes {dimension_semantics = [], scalar_prefetch = 0 : i64, scratch_operands = 0 : i64, tpu.core_type = #tpu.core_type<tc>} {
    %c0 = arith.constant 0 : index
    %c0_0 = arith.constant 0 : index
    %0 = vector.load %arg0[%c0, %c0_0] : memref<4x208xf32, #tpu.memory_space<vmem>>, vector<4x208xf32>
    %c0_1 = arith.constant 0 : index
    %c0_2 = arith.constant 0 : index
    %1 = vector.load %arg1[%c0_1, %c0_2] : memref<240x64xf32, #tpu.memory_space<vmem>>, vector<208x32xf32>
    %cst = arith.constant dense<0.000000e+00> : vector<4x32xf32>
    %2 = tpu.matmul %0, %1, %cst {dimension_numbers = #tpu.dot_dimension_numbers<[1], [0], [0], [1], [0, 0, 1, 1], [], []>} : vector<4x208xf32>, vector<208x32xf32>, vector<4x32xf32> -> vector<4x32xf32>
    %cst_3 = arith.constant 0.000000e+00 : f32
    %3 = vector.broadcast %cst_3 : f32 to vector<4x32xf32>
    %4 = arith.maximumf %2, %3 : vector<4x32xf32>
    %c0_4 = arith.constant 0 : index
    %c0_5 = arith.constant 0 : index
    %5 = vector.load %arg5[%c0_4, %c0_5] : memref<19x256xf32, #tpu.memory_space<vmem>>, vector<1x32xf32>
    %c1 = arith.constant 1 : index
    %c0_6 = arith.constant 0 : index
    %6 = vector.load %arg5[%c1, %c0_6] : memref<19x256xf32, #tpu.memory_space<vmem>>, vector<1x32xf32>
    %cst_7 = arith.constant dense<0.000000e+00> : vector<4xf32>
    %7 = vector.multi_reduction <add>, %4, %cst_7 [1] : vector<4x32xf32> to vector<4xf32>
    %8 = vector.shape_cast %7 : vector<4xf32> to vector<4x1xf32>
    %cst_8 = arith.constant 3.200000e+01 : f32
    %9 = vector.broadcast %cst_8 : f32 to vector<4x1xf32>
    %10 = arith.divf %8, %9 : vector<4x1xf32>
    %11 = vector.broadcast %10 : vector<4x1xf32> to vector<4x32xf32>
    %12 = arith.subf %4, %11 : vector<4x32xf32>
    %13 = arith.mulf %12, %12 : vector<4x32xf32>
    %cst_9 = arith.constant dense<0.000000e+00> : vector<4xf32>
    %14 = vector.multi_reduction <add>, %13, %cst_9 [1] : vector<4x32xf32> to vector<4xf32>
    %15 = vector.shape_cast %14 : vector<4xf32> to vector<4x1xf32>
    %cst_10 = arith.constant 3.200000e+01 : f32
    %16 = vector.broadcast %cst_10 : f32 to vector<4x1xf32>
    %17 = arith.divf %15, %16 : vector<4x1xf32>
    %18 = vector.broadcast %10 : vector<4x1xf32> to vector<4x32xf32>
    %19 = arith.subf %4, %18 : vector<4x32xf32>
    %cst_11 = arith.constant 9.99999974E-6 : f32
    %20 = vector.broadcast %cst_11 : f32 to vector<4x1xf32>
    %21 = arith.addf %17, %20 : vector<4x1xf32>
    %22 = math.rsqrt %21 : vector<4x1xf32>
    %23 = vector.broadcast %22 : vector<4x1xf32> to vector<4x32xf32>
    %24 = arith.mulf %19, %23 : vector<4x32xf32>
    %25 = vector.broadcast %5 : vector<1x32xf32> to vector<4x32xf32>
    %26 = arith.mulf %24, %25 : vector<4x32xf32>
    %27 = vector.broadcast %6 : vector<1x32xf32> to vector<4x32xf32>
    %28 = arith.addf %26, %27 : vector<4x32xf32>
    %c208 = arith.constant 208 : index
    %c0_12 = arith.constant 0 : index
    %29 = vector.load %arg1[%c208, %c0_12] : memref<240x64xf32, #tpu.memory_space<vmem>>, vector<32x64xf32>
    %cst_13 = arith.constant dense<0.000000e+00> : vector<4x64xf32>
    %30 = tpu.matmul %28, %29, %cst_13 {dimension_numbers = #tpu.dot_dimension_numbers<[1], [0], [0], [1], [0, 0, 1, 1], [], []>} : vector<4x32xf32>, vector<32x64xf32>, vector<4x64xf32> -> vector<4x64xf32>
    %c2 = arith.constant 2 : index
    %c0_14 = arith.constant 0 : index
    %31 = vector.load %arg5[%c2, %c0_14] : memref<19x256xf32, #tpu.memory_space<vmem>>, vector<1x64xf32>
    %c3 = arith.constant 3 : index
    %c0_15 = arith.constant 0 : index
    %32 = vector.load %arg5[%c3, %c0_15] : memref<19x256xf32, #tpu.memory_space<vmem>>, vector<1x64xf32>
    %cst_16 = arith.constant dense<0.000000e+00> : vector<4xf32>
    %33 = vector.multi_reduction <add>, %30, %cst_16 [1] : vector<4x64xf32> to vector<4xf32>
    %34 = vector.shape_cast %33 : vector<4xf32> to vector<4x1xf32>
    %cst_17 = arith.constant 6.400000e+01 : f32
    %35 = vector.broadcast %cst_17 : f32 to vector<4x1xf32>
    %36 = arith.divf %34, %35 : vector<4x1xf32>
    %37 = vector.broadcast %36 : vector<4x1xf32> to vector<4x64xf32>
    %38 = arith.subf %30, %37 : vector<4x64xf32>
    %39 = arith.mulf %38, %38 : vector<4x64xf32>
    %cst_18 = arith.constant dense<0.000000e+00> : vector<4xf32>
    %40 = vector.multi_reduction <add>, %39, %cst_18 [1] : vector<4x64xf32> to vector<4xf32>
    %41 = vector.shape_cast %40 : vector<4xf32> to vector<4x1xf32>
    %cst_19 = arith.constant 6.400000e+01 : f32
    %42 = vector.broadcast %cst_19 : f32 to vector<4x1xf32>
    %43 = arith.divf %41, %42 : vector<4x1xf32>
    %44 = vector.broadcast %36 : vector<4x1xf32> to vector<4x64xf32>
    %45 = arith.subf %30, %44 : vector<4x64xf32>
    %cst_20 = arith.constant 9.99999974E-6 : f32
    %46 = vector.broadcast %cst_20 : f32 to vector<4x1xf32>
    %47 = arith.addf %43, %46 : vector<4x1xf32>
    %48 = math.rsqrt %47 : vector<4x1xf32>
    %49 = vector.broadcast %48 : vector<4x1xf32> to vector<4x64xf32>
    %50 = arith.mulf %45, %49 : vector<4x64xf32>
    %51 = vector.broadcast %31 : vector<1x64xf32> to vector<4x64xf32>
    %52 = arith.mulf %50, %51 : vector<4x64xf32>
    %53 = vector.broadcast %32 : vector<1x64xf32> to vector<4x64xf32>
    %54 = arith.addf %52, %53 : vector<4x64xf32>
    %c0_21 = arith.constant 0 : index
    %c0_22 = arith.constant 0 : index
    %55 = vector.load %arg2[%c0_21, %c0_22] : memref<64x640xf32, #tpu.memory_space<vmem>>, vector<64x192xf32>
    %cst_23 = arith.constant dense<0.000000e+00> : vector<4x192xf32>
    %56 = tpu.matmul %54, %55, %cst_23 {dimension_numbers = #tpu.dot_dimension_numbers<[1], [0], [0], [1], [0, 0, 1, 1], [], []>} : vector<4x64xf32>, vector<64x192xf32>, vector<4x192xf32> -> vector<4x192xf32>
    %c4 = arith.constant 4 : index
    %c0_24 = arith.constant 0 : index
    %57 = vector.load %arg5[%c4, %c0_24] : memref<19x256xf32, #tpu.memory_space<vmem>>, vector<1x192xf32>
    %58 = vector.broadcast %57 : vector<1x192xf32> to vector<4x192xf32>
    %59 = arith.addf %56, %58 : vector<4x192xf32>
    %60 = vector.extract_strided_slice %59 {offsets = [0, 0], sizes = [4, 64], strides = [1, 1]} : vector<4x192xf32> to vector<4x64xf32>
    %cst_25 = arith.constant 2.500000e-01 : f32
    %61 = vector.broadcast %cst_25 : f32 to vector<4x64xf32>
    %62 = arith.mulf %60, %61 : vector<4x64xf32>
    %63 = vector.extract_strided_slice %59 {offsets = [0, 64], sizes = [4, 64], strides = [1, 1]} : vector<4x192xf32> to vector<4x64xf32>
    %64 = vector.extract_strided_slice %59 {offsets = [0, 128], sizes = [4, 64], strides = [1, 1]} : vector<4x192xf32> to vector<4x64xf32>
    %c0_26 = arith.constant 0 : index
    %c512 = arith.constant 512 : index
    %65 = vector.load %arg2[%c0_26, %c512] : memref<64x640xf32, #tpu.memory_space<vmem>>, vector<64x64xf32>
    %66 = tpu.iota {dimensions = array<i32: 0>} : vector<4x4xi32>
    %67 = tpu.iota {dimensions = array<i32: 1>} : vector<4x4xi32>
    %c2_i32 = arith.constant 2 : i32
    %68 = vector.broadcast %c2_i32 : i32 to vector<4x4xi32>
    %69 = arith.addi %66, %68 : vector<4x4xi32>
    %70 = arith.cmpi eq, %67, %69 : vector<4x4xi32>
    %c2_i32_27 = arith.constant 2 : i32
    %71 = vector.broadcast %c2_i32_27 : i32 to vector<4x4xi32>
    %72 = arith.subi %66, %71 : vector<4x4xi32>
    %73 = arith.cmpi eq, %67, %72 : vector<4x4xi32>
    %74 = arith.ori %70, %73 : vector<4x4xi1>
    %cst_28 = arith.constant 1.000000e+00 : f32
    %cst_29 = arith.constant 0.000000e+00 : f32
    %75 = vector.broadcast %cst_28 : f32 to vector<4x4xf32>
    %76 = vector.broadcast %cst_29 : f32 to vector<4x4xf32>
    %77 = arith.select %74, %75, %76 : vector<4x4xi1>, vector<4x4xf32>
    %cst_30 = arith.constant dense<0.000000e+00> : vector<4x64xf32>
    %78 = tpu.matmul %77, %63, %cst_30 {dimension_numbers = #tpu.dot_dimension_numbers<[1], [0], [0], [1], [0, 0, 1, 1], [], []>} : vector<4x4xf32>, vector<4x64xf32>, vector<4x64xf32> -> vector<4x64xf32>
    %cst_31 = arith.constant dense<0.000000e+00> : vector<4x64xf32>
    %79 = tpu.matmul %77, %64, %cst_31 {dimension_numbers = #tpu.dot_dimension_numbers<[1], [0], [0], [1], [0, 0, 1, 1], [], []>} : vector<4x4xf32>, vector<4x64xf32>, vector<4x64xf32> -> vector<4x64xf32>
    %80 = arith.mulf %62, %63 : vector<4x64xf32>
    %cst_32 = arith.constant dense<0.000000e+00> : vector<4x64xf32>
    %81 = tpu.matmul %80, %65, %cst_32 {dimension_numbers = #tpu.dot_dimension_numbers<[1], [0], [0], [1], [0, 0, 1, 1], [], []>} : vector<4x64xf32>, vector<64x64xf32>, vector<4x64xf32> -> vector<4x64xf32>
    %82 = arith.mulf %62, %78 : vector<4x64xf32>
    %cst_33 = arith.constant dense<0.000000e+00> : vector<4x64xf32>
    %83 = tpu.matmul %82, %65, %cst_33 {dimension_numbers = #tpu.dot_dimension_numbers<[1], [0], [0], [1], [0, 0, 1, 1], [], []>} : vector<4x64xf32>, vector<64x64xf32>, vector<4x64xf32> -> vector<4x64xf32>
    %84 = arith.maximumf %81, %83 : vector<4x64xf32>
    %85 = arith.subf %81, %84 : vector<4x64xf32>
    %86 = math.exp %85 : vector<4x64xf32>
    %87 = arith.subf %83, %84 : vector<4x64xf32>
    %88 = math.exp %87 : vector<4x64xf32>
    %89 = arith.mulf %86, %64 : vector<4x64xf32>
    %90 = arith.mulf %88, %79 : vector<4x64xf32>
    %91 = arith.addf %89, %90 : vector<4x64xf32>
    %92 = arith.addf %86, %88 : vector<4x64xf32>
    %93 = tpu.reciprocal %92 {approx = true} : vector<4x64xf32> -> vector<4x64xf32>
    %94 = arith.mulf %91, %93 : vector<4x64xf32>
    %c0_34 = arith.constant 0 : index
    %c256 = arith.constant 256 : index
    %95 = vector.load %arg2[%c0_34, %c256] : memref<64x640xf32, #tpu.memory_space<vmem>>, vector<64x64xf32>
    %cst_35 = arith.constant dense<0.000000e+00> : vector<4x64xf32>
    %96 = tpu.matmul %94, %95, %cst_35 {dimension_numbers = #tpu.dot_dimension_numbers<[1], [0], [0], [1], [0, 0, 1, 1], [], []>} : vector<4x64xf32>, vector<64x64xf32>, vector<4x64xf32> -> vector<4x64xf32>
    %c5 = arith.constant 5 : index
    %c0_36 = arith.constant 0 : index
    %97 = vector.load %arg5[%c5, %c0_36] : memref<19x256xf32, #tpu.memory_space<vmem>>, vector<1x64xf32>
    %98 = vector.broadcast %97 : vector<1x64xf32> to vector<4x64xf32>
    %99 = arith.addf %96, %98 : vector<4x64xf32>
    %100 = arith.addf %54, %99 : vector<4x64xf32>
    %c6 = arith.constant 6 : index
    %c0_37 = arith.constant 0 : index
    %101 = vector.load %arg5[%c6, %c0_37] : memref<19x256xf32, #tpu.memory_space<vmem>>, vector<1x64xf32>
    %c7 = arith.constant 7 : index
    %c0_38 = arith.constant 0 : index
    %102 = vector.load %arg5[%c7, %c0_38] : memref<19x256xf32, #tpu.memory_space<vmem>>, vector<1x64xf32>
    %cst_39 = arith.constant dense<0.000000e+00> : vector<4xf32>
    %103 = vector.multi_reduction <add>, %100, %cst_39 [1] : vector<4x64xf32> to vector<4xf32>
    %104 = vector.shape_cast %103 : vector<4xf32> to vector<4x1xf32>
    %cst_40 = arith.constant 6.400000e+01 : f32
    %105 = vector.broadcast %cst_40 : f32 to vector<4x1xf32>
    %106 = arith.divf %104, %105 : vector<4x1xf32>
    %107 = vector.broadcast %106 : vector<4x1xf32> to vector<4x64xf32>
    %108 = arith.subf %100, %107 : vector<4x64xf32>
    %109 = arith.mulf %108, %108 : vector<4x64xf32>
    %cst_41 = arith.constant dense<0.000000e+00> : vector<4xf32>
    %110 = vector.multi_reduction <add>, %109, %cst_41 [1] : vector<4x64xf32> to vector<4xf32>
    %111 = vector.shape_cast %110 : vector<4xf32> to vector<4x1xf32>
    %cst_42 = arith.constant 6.400000e+01 : f32
    %112 = vector.broadcast %cst_42 : f32 to vector<4x1xf32>
    %113 = arith.divf %111, %112 : vector<4x1xf32>
    %114 = vector.broadcast %106 : vector<4x1xf32> to vector<4x64xf32>
    %115 = arith.subf %100, %114 : vector<4x64xf32>
    %cst_43 = arith.constant 9.99999974E-6 : f32
    %116 = vector.broadcast %cst_43 : f32 to vector<4x1xf32>
    %117 = arith.addf %113, %116 : vector<4x1xf32>
    %118 = math.rsqrt %117 : vector<4x1xf32>
    %119 = vector.broadcast %118 : vector<4x1xf32> to vector<4x64xf32>
    %120 = arith.mulf %115, %119 : vector<4x64xf32>
    %121 = vector.broadcast %101 : vector<1x64xf32> to vector<4x64xf32>
    %122 = arith.mulf %120, %121 : vector<4x64xf32>
    %123 = vector.broadcast %102 : vector<1x64xf32> to vector<4x64xf32>
    %124 = arith.addf %122, %123 : vector<4x64xf32>
    %c0_44 = arith.constant 0 : index
    %c384 = arith.constant 384 : index
    %125 = vector.load %arg2[%c0_44, %c384] : memref<64x640xf32, #tpu.memory_space<vmem>>, vector<64x128xf32>
    %cst_45 = arith.constant dense<0.000000e+00> : vector<4x128xf32>
    %126 = tpu.matmul %124, %125, %cst_45 {dimension_numbers = #tpu.dot_dimension_numbers<[1], [0], [0], [1], [0, 0, 1, 1], [], []>} : vector<4x64xf32>, vector<64x128xf32>, vector<4x128xf32> -> vector<4x128xf32>
    %c8 = arith.constant 8 : index
    %c0_46 = arith.constant 0 : index
    %127 = vector.load %arg5[%c8, %c0_46] : memref<19x256xf32, #tpu.memory_space<vmem>>, vector<1x128xf32>
    %128 = vector.broadcast %127 : vector<1x128xf32> to vector<4x128xf32>
    %129 = arith.addf %126, %128 : vector<4x128xf32>
    %cst_47 = arith.constant 0.000000e+00 : f32
    %130 = vector.broadcast %cst_47 : f32 to vector<4x128xf32>
    %131 = arith.maximumf %129, %130 : vector<4x128xf32>
    %c0_48 = arith.constant 0 : index
    %c0_49 = arith.constant 0 : index
    %132 = vector.load %arg3[%c0_48, %c0_49] : memref<128x512xf32, #tpu.memory_space<vmem>>, vector<128x64xf32>
    %cst_50 = arith.constant dense<0.000000e+00> : vector<4x64xf32>
    %133 = tpu.matmul %131, %132, %cst_50 {dimension_numbers = #tpu.dot_dimension_numbers<[1], [0], [0], [1], [0, 0, 1, 1], [], []>} : vector<4x128xf32>, vector<128x64xf32>, vector<4x64xf32> -> vector<4x64xf32>
    %c9 = arith.constant 9 : index
    %c0_51 = arith.constant 0 : index
    %134 = vector.load %arg5[%c9, %c0_51] : memref<19x256xf32, #tpu.memory_space<vmem>>, vector<1x64xf32>
    %135 = vector.broadcast %134 : vector<1x64xf32> to vector<4x64xf32>
    %136 = arith.addf %133, %135 : vector<4x64xf32>
    %137 = arith.addf %124, %136 : vector<4x64xf32>
    %c10 = arith.constant 10 : index
    %c0_52 = arith.constant 0 : index
    %138 = vector.load %arg5[%c10, %c0_52] : memref<19x256xf32, #tpu.memory_space<vmem>>, vector<1x64xf32>
    %c11 = arith.constant 11 : index
    %c0_53 = arith.constant 0 : index
    %139 = vector.load %arg5[%c11, %c0_53] : memref<19x256xf32, #tpu.memory_space<vmem>>, vector<1x64xf32>
    %cst_54 = arith.constant dense<0.000000e+00> : vector<4xf32>
    %140 = vector.multi_reduction <add>, %137, %cst_54 [1] : vector<4x64xf32> to vector<4xf32>
    %141 = vector.shape_cast %140 : vector<4xf32> to vector<4x1xf32>
    %cst_55 = arith.constant 6.400000e+01 : f32
    %142 = vector.broadcast %cst_55 : f32 to vector<4x1xf32>
    %143 = arith.divf %141, %142 : vector<4x1xf32>
    %144 = vector.broadcast %143 : vector<4x1xf32> to vector<4x64xf32>
    %145 = arith.subf %137, %144 : vector<4x64xf32>
    %146 = arith.mulf %145, %145 : vector<4x64xf32>
    %cst_56 = arith.constant dense<0.000000e+00> : vector<4xf32>
    %147 = vector.multi_reduction <add>, %146, %cst_56 [1] : vector<4x64xf32> to vector<4xf32>
    %148 = vector.shape_cast %147 : vector<4xf32> to vector<4x1xf32>
    %cst_57 = arith.constant 6.400000e+01 : f32
    %149 = vector.broadcast %cst_57 : f32 to vector<4x1xf32>
    %150 = arith.divf %148, %149 : vector<4x1xf32>
    %151 = vector.broadcast %143 : vector<4x1xf32> to vector<4x64xf32>
    %152 = arith.subf %137, %151 : vector<4x64xf32>
    %cst_58 = arith.constant 9.99999974E-6 : f32
    %153 = vector.broadcast %cst_58 : f32 to vector<4x1xf32>
    %154 = arith.addf %150, %153 : vector<4x1xf32>
    %155 = math.rsqrt %154 : vector<4x1xf32>
    %156 = vector.broadcast %155 : vector<4x1xf32> to vector<4x64xf32>
    %157 = arith.mulf %152, %156 : vector<4x64xf32>
    %158 = vector.broadcast %138 : vector<1x64xf32> to vector<4x64xf32>
    %159 = arith.mulf %157, %158 : vector<4x64xf32>
    %160 = vector.broadcast %139 : vector<1x64xf32> to vector<4x64xf32>
    %161 = arith.addf %159, %160 : vector<4x64xf32>
    %162 = tpu.iota {dimensions = array<i32: 0>} : vector<2x4xi32>
    %163 = tpu.iota {dimensions = array<i32: 1>} : vector<2x4xi32>
    %c2_i32_59 = arith.constant 2 : i32
    %164 = vector.broadcast %c2_i32_59 : i32 to vector<2x4xi32>
    %165 = arith.muli %164, %162 : vector<2x4xi32>
    %166 = arith.cmpi eq, %163, %165 : vector<2x4xi32>
    %cst_60 = arith.constant 1.000000e+00 : f32
    %cst_61 = arith.constant 0.000000e+00 : f32
    %167 = vector.broadcast %cst_60 : f32 to vector<2x4xf32>
    %168 = vector.broadcast %cst_61 : f32 to vector<2x4xf32>
    %169 = arith.select %166, %167, %168 : vector<2x4xi1>, vector<2x4xf32>
    %c2_i32_62 = arith.constant 2 : i32
    %170 = vector.broadcast %c2_i32_62 : i32 to vector<2x4xi32>
    %171 = arith.muli %170, %162 : vector<2x4xi32>
    %c1_i32 = arith.constant 1 : i32
    %172 = vector.broadcast %c1_i32 : i32 to vector<2x4xi32>
    %173 = arith.addi %171, %172 : vector<2x4xi32>
    %174 = arith.cmpi eq, %163, %173 : vector<2x4xi32>
    %cst_63 = arith.constant 1.000000e+00 : f32
    %cst_64 = arith.constant 0.000000e+00 : f32
    %175 = vector.broadcast %cst_63 : f32 to vector<2x4xf32>
    %176 = vector.broadcast %cst_64 : f32 to vector<2x4xf32>
    %177 = arith.select %174, %175, %176 : vector<2x4xi1>, vector<2x4xf32>
    %cst_65 = arith.constant dense<0.000000e+00> : vector<2x64xf32>
    %178 = tpu.matmul %169, %161, %cst_65 {dimension_numbers = #tpu.dot_dimension_numbers<[1], [0], [0], [1], [0, 0, 1, 1], [], []>} : vector<2x4xf32>, vector<4x64xf32>, vector<2x64xf32> -> vector<2x64xf32>
    %cst_66 = arith.constant dense<0.000000e+00> : vector<2x64xf32>
    %179 = tpu.matmul %177, %161, %cst_66 {dimension_numbers = #tpu.dot_dimension_numbers<[1], [0], [0], [1], [0, 0, 1, 1], [], []>} : vector<2x4xf32>, vector<4x64xf32>, vector<2x64xf32> -> vector<2x64xf32>
    %c0_67 = arith.constant 0 : index
    %c128 = arith.constant 128 : index
    %180 = vector.load %arg3[%c0_67, %c128] : memref<128x512xf32, #tpu.memory_space<vmem>>, vector<64x256xf32>
    %cst_68 = arith.constant dense<0.000000e+00> : vector<2x256xf32>
    %181 = tpu.matmul %178, %180, %cst_68 {dimension_numbers = #tpu.dot_dimension_numbers<[1], [0], [0], [1], [0, 0, 1, 1], [], []>} : vector<2x64xf32>, vector<64x256xf32>, vector<2x256xf32> -> vector<2x256xf32>
    %c64 = arith.constant 64 : index
    %c128_69 = arith.constant 128 : index
    %182 = vector.load %arg3[%c64, %c128_69] : memref<128x512xf32, #tpu.memory_space<vmem>>, vector<64x256xf32>
    %cst_70 = arith.constant dense<0.000000e+00> : vector<2x256xf32>
    %183 = tpu.matmul %179, %182, %cst_70 {dimension_numbers = #tpu.dot_dimension_numbers<[1], [0], [0], [1], [0, 0, 1, 1], [], []>} : vector<2x64xf32>, vector<64x256xf32>, vector<2x256xf32> -> vector<2x256xf32>
    %184 = arith.addf %181, %183 : vector<2x256xf32>
    %c12 = arith.constant 12 : index
    %c0_71 = arith.constant 0 : index
    %185 = vector.load %arg5[%c12, %c0_71] : memref<19x256xf32, #tpu.memory_space<vmem>>, vector<1x256xf32>
    %186 = vector.broadcast %185 : vector<1x256xf32> to vector<2x256xf32>
    %187 = arith.addf %184, %186 : vector<2x256xf32>
    %c13 = arith.constant 13 : index
    %c0_72 = arith.constant 0 : index
    %188 = vector.load %arg5[%c13, %c0_72] : memref<19x256xf32, #tpu.memory_space<vmem>>, vector<1x256xf32>
    %c14 = arith.constant 14 : index
    %c0_73 = arith.constant 0 : index
    %189 = vector.load %arg5[%c14, %c0_73] : memref<19x256xf32, #tpu.memory_space<vmem>>, vector<1x256xf32>
    %cst_74 = arith.constant dense<0.000000e+00> : vector<2xf32>
    %190 = vector.multi_reduction <add>, %187, %cst_74 [1] : vector<2x256xf32> to vector<2xf32>
    %191 = vector.shape_cast %190 : vector<2xf32> to vector<2x1xf32>
    %cst_75 = arith.constant 2.560000e+02 : f32
    %192 = vector.broadcast %cst_75 : f32 to vector<2x1xf32>
    %193 = arith.divf %191, %192 : vector<2x1xf32>
    %194 = vector.broadcast %193 : vector<2x1xf32> to vector<2x256xf32>
    %195 = arith.subf %187, %194 : vector<2x256xf32>
    %196 = arith.mulf %195, %195 : vector<2x256xf32>
    %cst_76 = arith.constant dense<0.000000e+00> : vector<2xf32>
    %197 = vector.multi_reduction <add>, %196, %cst_76 [1] : vector<2x256xf32> to vector<2xf32>
    %198 = vector.shape_cast %197 : vector<2xf32> to vector<2x1xf32>
    %cst_77 = arith.constant 2.560000e+02 : f32
    %199 = vector.broadcast %cst_77 : f32 to vector<2x1xf32>
    %200 = arith.divf %198, %199 : vector<2x1xf32>
    %201 = vector.broadcast %193 : vector<2x1xf32> to vector<2x256xf32>
    %202 = arith.subf %187, %201 : vector<2x256xf32>
    %cst_78 = arith.constant 9.99999974E-6 : f32
    %203 = vector.broadcast %cst_78 : f32 to vector<2x1xf32>
    %204 = arith.addf %200, %203 : vector<2x1xf32>
    %205 = math.rsqrt %204 : vector<2x1xf32>
    %206 = vector.broadcast %205 : vector<2x1xf32> to vector<2x256xf32>
    %207 = arith.mulf %202, %206 : vector<2x256xf32>
    %208 = vector.broadcast %188 : vector<1x256xf32> to vector<2x256xf32>
    %209 = arith.mulf %207, %208 : vector<2x256xf32>
    %210 = vector.broadcast %189 : vector<1x256xf32> to vector<2x256xf32>
    %211 = arith.addf %209, %210 : vector<2x256xf32>
    %cst_79 = arith.constant 0.000000e+00 : f32
    %212 = vector.broadcast %cst_79 : f32 to vector<2x256xf32>
    %213 = arith.maximumf %211, %212 : vector<2x256xf32>
    %c0_80 = arith.constant 0 : index
    %c0_81 = arith.constant 0 : index
    %214 = vector.load %arg4[%c0_80, %c0_81] : memref<256x128xf32, #tpu.memory_space<vmem>>, vector<256x128xf32>
    %cst_82 = arith.constant dense<0.000000e+00> : vector<2x128xf32>
    %215 = tpu.matmul %213, %214, %cst_82 {dimension_numbers = #tpu.dot_dimension_numbers<[1], [0], [0], [1], [0, 0, 1, 1], [], []>} : vector<2x256xf32>, vector<256x128xf32>, vector<2x128xf32> -> vector<2x128xf32>
    %c15 = arith.constant 15 : index
    %c0_83 = arith.constant 0 : index
    %216 = vector.load %arg5[%c15, %c0_83] : memref<19x256xf32, #tpu.memory_space<vmem>>, vector<1x128xf32>
    %217 = vector.broadcast %216 : vector<1x128xf32> to vector<2x128xf32>
    %218 = arith.addf %215, %217 : vector<2x128xf32>
    %c16 = arith.constant 16 : index
    %c0_84 = arith.constant 0 : index
    %219 = vector.load %arg5[%c16, %c0_84] : memref<19x256xf32, #tpu.memory_space<vmem>>, vector<1x128xf32>
    %c17 = arith.constant 17 : index
    %c0_85 = arith.constant 0 : index
    %220 = vector.load %arg5[%c17, %c0_85] : memref<19x256xf32, #tpu.memory_space<vmem>>, vector<1x128xf32>
    %cst_86 = arith.constant dense<0.000000e+00> : vector<2xf32>
    %221 = vector.multi_reduction <add>, %218, %cst_86 [1] : vector<2x128xf32> to vector<2xf32>
    %222 = vector.shape_cast %221 : vector<2xf32> to vector<2x1xf32>
    %cst_87 = arith.constant 1.280000e+02 : f32
    %223 = vector.broadcast %cst_87 : f32 to vector<2x1xf32>
    %224 = arith.divf %222, %223 : vector<2x1xf32>
    %225 = vector.broadcast %224 : vector<2x1xf32> to vector<2x128xf32>
    %226 = arith.subf %218, %225 : vector<2x128xf32>
    %227 = arith.mulf %226, %226 : vector<2x128xf32>
    %cst_88 = arith.constant dense<0.000000e+00> : vector<2xf32>
    %228 = vector.multi_reduction <add>, %227, %cst_88 [1] : vector<2x128xf32> to vector<2xf32>
    %229 = vector.shape_cast %228 : vector<2xf32> to vector<2x1xf32>
    %cst_89 = arith.constant 1.280000e+02 : f32
    %230 = vector.broadcast %cst_89 : f32 to vector<2x1xf32>
    %231 = arith.divf %229, %230 : vector<2x1xf32>
    %232 = vector.broadcast %224 : vector<2x1xf32> to vector<2x128xf32>
    %233 = arith.subf %218, %232 : vector<2x128xf32>
    %cst_90 = arith.constant 9.99999974E-6 : f32
    %234 = vector.broadcast %cst_90 : f32 to vector<2x1xf32>
    %235 = arith.addf %231, %234 : vector<2x1xf32>
    %236 = math.rsqrt %235 : vector<2x1xf32>
    %237 = vector.broadcast %236 : vector<2x1xf32> to vector<2x128xf32>
    %238 = arith.mulf %233, %237 : vector<2x128xf32>
    %239 = vector.broadcast %219 : vector<1x128xf32> to vector<2x128xf32>
    %240 = arith.mulf %238, %239 : vector<2x128xf32>
    %241 = vector.broadcast %220 : vector<1x128xf32> to vector<2x128xf32>
    %242 = arith.addf %240, %241 : vector<2x128xf32>
    %cst_91 = arith.constant 0.000000e+00 : f32
    %243 = vector.broadcast %cst_91 : f32 to vector<2x128xf32>
    %244 = arith.maximumf %242, %243 : vector<2x128xf32>
    %c0_92 = arith.constant 0 : index
    %c384_93 = arith.constant 384 : index
    %245 = vector.load %arg3[%c0_92, %c384_93] : memref<128x512xf32, #tpu.memory_space<vmem>>, vector<128x128xf32>
    %cst_94 = arith.constant dense<0.000000e+00> : vector<2x128xf32>
    %246 = tpu.matmul %244, %245, %cst_94 {dimension_numbers = #tpu.dot_dimension_numbers<[1], [0], [0], [1], [0, 0, 1, 1], [], []>} : vector<2x128xf32>, vector<128x128xf32>, vector<2x128xf32> -> vector<2x128xf32>
    %c18 = arith.constant 18 : index
    %c0_95 = arith.constant 0 : index
    %247 = vector.load %arg5[%c18, %c0_95] : memref<19x256xf32, #tpu.memory_space<vmem>>, vector<1x128xf32>
    %248 = vector.broadcast %247 : vector<1x128xf32> to vector<2x128xf32>
    %249 = arith.addf %246, %248 : vector<2x128xf32>
    %250 = math.tanh %249 : vector<2x128xf32>
    %c0_96 = arith.constant 0 : index
    %c0_97 = arith.constant 0 : index
    %251 = vector.load %arg6[%c0_96, %c0_97] : memref<2x128xf32, #tpu.memory_space<vmem>>, vector<2x128xf32>
    tpu.vector_store %arg6[%c0_96, %c0_97], %250 {strides = array<i32>} : memref<2x128xf32, #tpu.memory_space<vmem>>, vector<2x128xf32>,
    return
  }
}

</mosaic_0001>

<llo_original>
// kernel: model_forward.1
$region0: #{model_forward.1}
  #allocation0 [shape = 'u32[]', space=smem, size = 0x4, offset = 0x4, fixed_abs, tag = 'smem constant byte address 0x4 - core index']
  #allocation1 [shape = 'u32[144,128]{1,0:T(1,128)}', space=vmem, size = 0x12000, scoped, tag = 'internal scratch']
  %s0 = inlined_call_operand.vmem [shape: f32[4,208], index: 0, kind: input, shape index: {}]
  %s1 = inlined_call_operand.vmem [shape: f32[240,64], index: 1, kind: input, shape index: {}]
  %s2 = inlined_call_operand.vmem [shape: f32[64,640], index: 2, kind: input, shape index: {}]
  %s3 = inlined_call_operand.hbm [shape: f32[128,512], index: 3, kind: input, shape index: {}]
  %s4 = inlined_call_operand.hbm [shape: f32[256,128], index: 4, kind: input, shape index: {}]
  %s5 = inlined_call_operand.vmem [shape: f32[19,256], index: 5, kind: input, shape index: {}]
  %s6 = inlined_call_operand.vmem [shape: f32[2,128], index: 6, kind: output, shape index: {}]
  %s7 = sld [smem:[#allocation0]]
  $region42: #{model_forward.1} parent=0
    _
  %s9 = ssub.s32 1, %s7
  %s10 = scalar_select 0, %s9, %s7
  $region1: #{model_forward.1} parent=0
    #allocation2 [shape = 'u8[262144]{0}', space=vmem, size = 0x40000, scoped, tag = 'input window, operand 3, single buffered']
    #allocation3 [shape = 's32[1]{0}', space=sflag, size = 0x4, scoped, tag = 'scoped memory for model_forward.1']
    #allocation4 [shape = 'u8[131072]{0}', space=vmem, size = 0x20000, scoped, tag = 'input window, operand 4, single buffered']
    #allocation5 [shape = 's32[1]{0}', space=sflag, size = 0x4, scoped, tag = 'scoped memory for model_forward.1']
    %11 = vsyncpa [#allocation3], 0
    %12 = vsyncpa [#allocation5], 0
    // Predicated region
    $region2: #{model_forward.1} parent=1 // pred_check
      _
    $region3: #{model_forward.1} parent=1 // pred_check_branch
      %14 = sbr.rel (0) target = $region5
    $region4: #{model_forward.1} parent=1 // pred_region
      _
    $region5: #{model_forward.1} parent=1 // pred_fallthru
      _
    // Predicated region
    $region6: #{model_forward.1} parent=1 // pred_check
      _
    $region7: #{model_forward.1} parent=1 // pred_check_branch
      %16 = sbr.rel (0) target = $region9
    $region8: #{model_forward.1} parent=1 // pred_region
      _
    $region9: #{model_forward.1} parent=1 // pred_fallthru
      _
    // Predicated region
    $region10: #{model_forward.1} parent=1 // pred_check
      _
    $region11: #{model_forward.1} parent=1 // pred_check_branch
      %18 = sbr.rel (0) target = $region13
    $region12: #{model_forward.1} parent=1 // pred_region
      _
    $region13: #{model_forward.1} parent=1 // pred_fallthru
      _
    // Predicated region
    $region14: #{model_forward.1} parent=1 // pred_check
      _
    $region15: #{model_forward.1} parent=1 // pred_check_branch
      %20 = sbr.rel (0) target = $region17
    $region16: #{model_forward.1} parent=1 // pred_region
      %s22 = ssub.s32 8192, 8192
      %23 = vsyncadd [#allocation3], %s22
      %s24 = sshll.u32 [#allocation2], 4
      %s25 = int_to_ptr.vmem [resolvable:$true] %s24
      %30 = dma.hbm_to_vmem [thread:$0]  %s3, 8192, %s25, [#allocation3], 512, 512, 32
    $region17: #{model_forward.1} parent=1 // pred_fallthru
      _
    // Predicated region
    $region18: #{model_forward.1} parent=1 // pred_check
      _
    $region19: #{model_forward.1} parent=1 // pred_check_branch
      %32 = sbr.rel (0) target = $region21
    $region20: #{model_forward.1} parent=1 // pred_region
      %s34 = ssub.s32 4096, 4096
      %35 = vsyncadd [#allocation5], %s34
      %s36 = sshll.u32 [#allocation4], 4
      %s37 = int_to_ptr.vmem [resolvable:$true] %s36
      %42 = dma.hbm_to_vmem [thread:$0]  %s4, 4096, %s37, [#allocation5], 128, 128, 8
    $region21: #{model_forward.1} parent=1 // pred_fallthru
      _
    // Predicated region
    $region22: #{model_forward.1} parent=1 // pred_check
      _
    $region23: #{model_forward.1} parent=1 // pred_check_branch
      %44 = sbr.rel (0) target = $region25
    $region24: #{model_forward.1} parent=1 // pred_region
      _
    $region25: #{model_forward.1} parent=1 // pred_fallthru
      _
    // Predicated region
    $region26: #{model_forward.1} parent=1 // pred_check
      _
    $region27: #{model_forward.1} parent=1 // pred_check_branch
      %46 = sbr.rel (0) target = $region29
    $region28: #{model_forward.1} parent=1 // pred_region
      %47 = dma.done [#allocation3], 8192
    $region29: #{model_forward.1} parent=1 // pred_fallthru
      _
    // Predicated region
    $region30: #{model_forward.1} parent=1 // pred_check
      _
    $region31: #{model_forward.1} parent=1 // pred_check_branch
      %49 = sbr.rel (0) target = $region33
    $region32: #{model_forward.1} parent=1 // pred_region
      %50 = dma.done [#allocation5], 4096
    $region33: #{model_forward.1} parent=1 // pred_fallthru
      _
    %v51 = vld [vmem:[%s0] sm:$0xff]
    %v52 = vld [vmem:[%s1] sm:$0xff]
    %v53 = vld [vmem:[%s1 + $0x8] sm:$0xff]
    %v54 = vld [vmem:[%s1 + $0x10] sm:$0xff]
    %v55 = vld [vmem:[%s1 + $0x18] sm:$0xff]
    %v56 = vld [vmem:[%s1 + $0x20] sm:$0xff]
    %v57 = vld [vmem:[%s1 + $0x28] sm:$0xff]
    %v58 = vld [vmem:[%s1 + $0x30] sm:$0xff]
    %v59 = vld [vmem:[%s1 + $0x38] sm:$0xff]
    %v60 = vld [vmem:[%s1 + $0x40] sm:$0xff]
    %v61 = vld [vmem:[%s1 + $0x48] sm:$0xff]
    %v62 = vld [vmem:[%s1 + $0x50] sm:$0xff]
    %v63 = vld [vmem:[%s1 + $0x58] sm:$0xff]
    %v64 = vld [vmem:[%s1 + $0x60] sm:$0xff]
    %v65 = vld [vmem:[%s1 + $0x68] sm:$0xff]
    %v66 = vld [vmem:[%s1 + $0x70] sm:$0xff]
    %v67 = vld [vmem:[%s1 + $0x78] sm:$0xff]
    %v68 = vld [vmem:[%s1 + $0x80] sm:$0xff]
    %v69 = vld [vmem:[%s1 + $0x88] sm:$0xff]
    %v70 = vld [vmem:[%s1 + $0x90] sm:$0xff]
    %v71 = vld [vmem:[%s1 + $0x98] sm:$0xff]
    %v72 = vld [vmem:[%s1 + $0xa0] sm:$0xff]
    %v73 = vld [vmem:[%s1 + $0xa8] sm:$0xff]
    %v74 = vld [vmem:[%s1 + $0xb0] sm:$0xff]
    %v75 = vld [vmem:[%s1 + $0xb8] sm:$0xff]
    %v76 = vld [vmem:[%s1 + $0xc0] sm:$0xff]
    %v77 = vld [vmem:[%s1 + $0xc8] sm:$0xff]
    %v79 = vcombine.high %v51, %v51
    %vm80 = vcmask 654336
    %v81 = vsel %vm80, %v79, 0
    %83 = vmatprep.subr.mxu0 0.0
    %84 = vmatpush1.msra.mxu0 %v67
    %85 = vmatprep.subr.mxu0 0.0
    %86 = vmatpush1.msra.mxu0 %v66
    %87 = vmatprep.subr.mxu0 0.0
    %88 = vmatpush1.msra.mxu0 %v65
    %89 = vmatprep.subr.mxu0 0.0
    %90 = vmatpush1.msra.mxu0 %v64
    %91 = vmatprep.subr.mxu0 0.0
    %92 = vmatpush1.msra.mxu0 %v63
    %93 = vmatprep.subr.mxu0 0.0
    %94 = vmatpush1.msra.mxu0 %v62
    %95 = vmatprep.subr.mxu0 0.0
    %96 = vmatpush1.msra.mxu0 %v61
    %97 = vmatprep.subr.mxu0 0.0
    %98 = vmatpush1.msra.mxu0 %v60
    %99 = vmatprep.subr.mxu0 0.0
    %100 = vmatpush1.msra.mxu0 %v59
    %101 = vmatprep.subr.mxu0 0.0
    %102 = vmatpush1.msra.mxu0 %v58
    %103 = vmatprep.subr.mxu0 0.0
    %104 = vmatpush1.msra.mxu0 %v57
    %105 = vmatprep.subr.mxu0 0.0
    %106 = vmatpush1.msra.mxu0 %v56
    %107 = vmatprep.subr.mxu0 0.0
    %108 = vmatpush1.msra.mxu0 %v55
    %109 = vmatprep.subr.mxu0 0.0
    %110 = vmatpush1.msra.mxu0 %v54
    %111 = vmatprep.subr.mxu0 0.0
    %112 = vmatpush1.msra.mxu0 %v53
    %113 = vmatprep.subr.mxu0 0.0
    %114 = vmatpush1.msra.mxu0 %v52
    %115 = vmatprep.subr.mxu0 0.0
    %116 = vmatpush2.msra.mxu0 0.0
    %117 = vmatprep.subr.mxu0 0.0
    %118 = vmatpush2.msra.mxu0 0.0
    %119 = vmatprep.subr.mxu0 0.0
    %120 = vmatpush2.msra.mxu0 0.0
    %121 = vmatprep.subr.mxu0 0.0
    %122 = vmatpush2.msra.mxu0 0.0
    %123 = vmatprep.subr.mxu0 0.0
    %124 = vmatpush2.msra.mxu0 0.0
    %125 = vmatprep.subr.mxu0 0.0
    %126 = vmatpush2.msra.mxu0 0.0
    %127 = vmatprep.subr.mxu0 0.0
    %128 = vmatpush2.msra.mxu0 %v77
    %129 = vmatprep.subr.mxu0 0.0
    %130 = vmatpush2.msra.mxu0 %v76
    %131 = vmatprep.subr.mxu0 0.0
    %132 = vmatpush2.msra.mxu0 %v75
    %133 = vmatprep.subr.mxu0 0.0
    %134 = vmatpush2.msra.mxu0 %v74
    %135 = vmatprep.subr.mxu0 0.0
    %136 = vmatpush2.msra.mxu0 %v73
    %137 = vmatprep.subr.mxu0 0.0
    %138 = vmatpush2.msra.mxu0 %v72
    %139 = vmatprep.subr.mxu0 0.0
    %140 = vmatpush2.msra.mxu0 %v71
    %141 = vmatprep.subr.mxu0 0.0
    %142 = vmatpush2.msra.mxu0 %v70
    %143 = vmatprep.subr.mxu0 0.0
    %144 = vmatpush2.msra.mxu0 %v69
    %145 = vmatprep.subr.mxu0 0.0
    %146 = vmatpush2.msra.mxu0 %v68
    %147 = vmatprep.mubr.f32.mxu0 %v81
    %148 = vmatmul.mubr.f32.gmra.mxu0 %v51
    %v149 = vpop.f32.mrf.mxu0
    %v150 = vadd.f32 0.0, %v149
    %v151 = vpop.f32.mrf.mxu0
    %152 = vdwg.mxu0
    %v153 = vmax.f32 %v150, 0.0
    %v154 = vld [vmem:[%s5] ss:$0 sm:$0xff]
    %v155 = vld [vmem:[%s5 + $0x1] ss:$0 sm:$0xff]
    %vm156 = vcmask 257024
    %v157 = vsel %vm156, %v153, 0.0
    %158 = vadd.xlane.f32.xlu0 %v157
    %v159 = vpop.xlane.xlu0 %158
    %v160 = vrcp.pop 32.0
    %v161 = vmul.f32 %v159, %v160
    %v162 = vsub.f32 %v153, %v161
    %v163 = vmul.f32 %v162, %v162
    %v164 = vsel %vm156, %v163, 0.0
    %165 = vadd.xlane.f32.xlu0 %v164
    %v166 = vpop.xlane.xlu0 %165
    %v167 = vmul.f32 %v166, %v160
    %v168 = vadd.f32 %v167, 1e-05
    %v169 = vrsqrt.pop %v168
    %v170 = vmul.f32 %v162, %v169
    %v171 = vmul.f32 %v170, %v154
    %v172 = vadd.f32 %v171, %v155
    %v173 = vld [vmem:[%s1 + $0xd0] sm:$0xff]
    %v174 = vld [vmem:[%s1 + $0xd8] sm:$0xff]
    %v175 = vld [vmem:[%s1 + $0xe0] sm:$0xff]
    %v176 = vld [vmem:[%s1 + $0xe8] sm:$0xff]
    %vm177 = vcmask 261120
    %v179 = vsel %vm177, %v172, 0
    %181 = vmatprep.subr.mxu0 0.0
    %182 = vmatpush1.msra.mxu0 0.0
    %183 = vmatprep.subr.mxu0 0.0
    %184 = vmatpush1.msra.mxu0 0.0
    %185 = vmatprep.subr.mxu0 0.0
    %186 = vmatpush1.msra.mxu0 0.0
    %187 = vmatprep.subr.mxu0 0.0
    %188 = vmatpush1.msra.mxu0 0.0
    %189 = vmatprep.subr.mxu0 0.0
    %190 = vmatpush1.msra.mxu0 0.0
    %191 = vmatprep.subr.mxu0 0.0
    %192 = vmatpush1.msra.mxu0 0.0
    %193 = vmatprep.subr.mxu0 0.0
    %194 = vmatpush1.msra.mxu0 0.0
    %195 = vmatprep.subr.mxu0 0.0
    %196 = vmatpush1.msra.mxu0 0.0
    %197 = vmatprep.subr.mxu0 0.0
    %198 = vmatpush1.msra.mxu0 0.0
    %199 = vmatprep.subr.mxu0 0.0
    %200 = vmatpush1.msra.mxu0 0.0
    %201 = vmatprep.subr.mxu0 0.0
    %202 = vmatpush1.msra.mxu0 0.0
    %203 = vmatprep.subr.mxu0 0.0
    %204 = vmatpush1.msra.mxu0 0.0
    %205 = vmatprep.subr.mxu0 0.0
    %206 = vmatpush1.msra.mxu0 %v176
    %207 = vmatprep.subr.mxu0 0.0
    %208 = vmatpush1.msra.mxu0 %v175
    %209 = vmatprep.subr.mxu0 0.0
    %210 = vmatpush1.msra.mxu0 %v174
    %211 = vmatprep.subr.mxu0 0.0
    %212 = vmatpush1.msra.mxu0 %v173
    %213 = vmatprep.subr.mxu0 0.0
    %214 = vmatpush2.msra.mxu0 0.0
    %215 = vmatprep.subr.mxu0 0.0
    %216 = vmatpush2.msra.mxu0 0.0
    %217 = vmatprep.subr.mxu0 0.0
    %218 = vmatpush2.msra.mxu0 0.0
    %219 = vmatprep.subr.mxu0 0.0
    %220 = vmatpush2.msra.mxu0 0.0
    %221 = vmatprep.subr.mxu0 0.0
    %222 = vmatpush2.msra.mxu0 0.0
    %223 = vmatprep.subr.mxu0 0.0
    %224 = vmatpush2.msra.mxu0 0.0
    %225 = vmatprep.subr.mxu0 0.0
    %226 = vmatpush2.msra.mxu0 0.0
    %227 = vmatprep.subr.mxu0 0.0
    %228 = vmatpush2.msra.mxu0 0.0
    %229 = vmatprep.subr.mxu0 0.0
    %230 = vmatpush2.msra.mxu0 0.0
    %231 = vmatprep.subr.mxu0 0.0
    %232 = vmatpush2.msra.mxu0 0.0
    %233 = vmatprep.subr.mxu0 0.0
    %234 = vmatpush2.msra.mxu0 0.0
    %235 = vmatprep.subr.mxu0 0.0
    %236 = vmatpush2.msra.mxu0 0.0
    %237 = vmatprep.subr.mxu0 0.0
    %238 = vmatpush2.msra.mxu0 0.0
    %239 = vmatprep.subr.mxu0 0.0
    %240 = vmatpush2.msra.mxu0 0.0
    %241 = vmatprep.subr.mxu0 0.0
    %242 = vmatpush2.msra.mxu0 0.0
    %243 = vmatprep.subr.mxu0 0.0
    %244 = vmatpush2.msra.mxu0 0.0
    %245 = vmatprep.mubr.f32.mxu0 0.0
    %246 = vmatmul.mubr.f32.gmra.mxu0 %v179
    %v247 = vpop.f32.mrf.mxu0
    %v248 = vadd.f32 0.0, %v247
    %v249 = vpop.f32.mrf.mxu0
    %250 = vdwg.mxu0
    %v251 = vld [vmem:[%s5 + $0x2] ss:$0 sm:$0xff]
    %v252 = vld [vmem:[%s5 + $0x3] ss:$0 sm:$0xff]
    %vm253 = vcmask 519168
    %v254 = vsel %vm253, %v248, 0.0
    %255 = vadd.xlane.f32.xlu0 %v254
    %v256 = vpop.xlane.xlu0 %255
    %v257 = vrcp.pop 64.0
    %v258 = vmul.f32 %v256, %v257
    %v259 = vsub.f32 %v248, %v258
    %v260 = vmul.f32 %v259, %v259
    %v261 = vsel %vm253, %v260, 0.0
    %262 = vadd.xlane.f32.xlu0 %v261
    %v263 = vpop.xlane.xlu0 %262
    %v264 = vmul.f32 %v263, %v257
    %v265 = vadd.f32 %v264, 1e-05
    %v266 = vrsqrt.pop %v265
    %v267 = vmul.f32 %v259, %v266
    %v268 = vmul.f32 %v267, %v251
    %v269 = vadd.f32 %v268, %v252
    %v270 = vld [vmem:[%s2] sm:$0xff]
    %v271 = vld [vmem:[%s2 + $0x8] sm:$0xff]
    %v272 = vld [vmem:[%s2 + $0x28] sm:$0xff]
    %v273 = vld [vmem:[%s2 + $0x30] sm:$0xff]
    %v274 = vld [vmem:[%s2 + $0x50] sm:$0xff]
    %v275 = vld [vmem:[%s2 + $0x58] sm:$0xff]
    %v276 = vld [vmem:[%s2 + $0x78] sm:$0xff]
    %v277 = vld [vmem:[%s2 + $0x80] sm:$0xff]
    %v278 = vld [vmem:[%s2 + $0xa0] sm:$0xff]
    %v279 = vld [vmem:[%s2 + $0xa8] sm:$0xff]
    %v280 = vld [vmem:[%s2 + $0xc8] sm:$0xff]
    %v281 = vld [vmem:[%s2 + $0xd0] sm:$0xff]
    %v282 = vld [vmem:[%s2 + $0xf0] sm:$0xff]
    %v283 = vld [vmem:[%s2 + $0xf8] sm:$0xff]
    %v284 = vld [vmem:[%s2 + $0x118] sm:$0xff]
    %v285 = vld [vmem:[%s2 + $0x120] sm:$0xff]
    %s286 = scalar_lea.vmem %s5, 4
    %v287 = vld [vmem:[%s286] ss:$8 sm:$0x3]
    %v289 = vlaneseq
    %v290 = vshrl.u32 %v289, 7
    %v291 = vsub.s32 0, %v290
    %v292 = vrot.slane %v287, %v291
    %v293 = vlaneseq
    %v294 = vshrl.u32 %v293, 7
    %v295 = vsub.s32 1, %v294
    %v296 = vrot.slane %v287, %v295
    %vm299 = vcmask 523264
    %v301 = vsel %vm299, %v269, 0
    %303 = vmatprep.subr.mxu0 0.0
    %304 = vmatpush1.msra.mxu0 0.0
    %305 = vmatprep.subr.mxu0 0.0
    %306 = vmatpush1.msra.mxu0 0.0
    %307 = vmatprep.subr.mxu0 0.0
    %308 = vmatpush1.msra.mxu0 0.0
    %309 = vmatprep.subr.mxu0 0.0
    %310 = vmatpush1.msra.mxu0 0.0
    %311 = vmatprep.subr.mxu0 0.0
    %312 = vmatpush1.msra.mxu0 0.0
    %313 = vmatprep.subr.mxu0 0.0
    %314 = vmatpush1.msra.mxu0 0.0
    %315 = vmatprep.subr.mxu0 0.0
    %316 = vmatpush1.msra.mxu0 0.0
    %317 = vmatprep.subr.mxu0 0.0
    %318 = vmatpush1.msra.mxu0 0.0
    %319 = vmatprep.subr.mxu0 %v285
    %320 = vmatpush1.msra.mxu0 %v284
    %321 = vmatprep.subr.mxu0 %v283
    %322 = vmatpush1.msra.mxu0 %v282
    %323 = vmatprep.subr.mxu0 %v281
    %324 = vmatpush1.msra.mxu0 %v280
    %325 = vmatprep.subr.mxu0 %v279
    %326 = vmatpush1.msra.mxu0 %v278
    %327 = vmatprep.subr.mxu0 %v277
    %328 = vmatpush1.msra.mxu0 %v276
    %329 = vmatprep.subr.mxu0 %v275
    %330 = vmatpush1.msra.mxu0 %v274
    %331 = vmatprep.subr.mxu0 %v273
    %332 = vmatpush1.msra.mxu0 %v272
    %333 = vmatprep.subr.mxu0 %v271
    %334 = vmatpush1.msra.mxu0 %v270
    %335 = vmatprep.subr.mxu0 0.0
    %336 = vmatpush2.msra.mxu0 0.0
    %337 = vmatprep.subr.mxu0 0.0
    %338 = vmatpush2.msra.mxu0 0.0
    %339 = vmatprep.subr.mxu0 0.0
    %340 = vmatpush2.msra.mxu0 0.0
    %341 = vmatprep.subr.mxu0 0.0
    %342 = vmatpush2.msra.mxu0 0.0
    %343 = vmatprep.subr.mxu0 0.0
    %344 = vmatpush2.msra.mxu0 0.0
    %345 = vmatprep.subr.mxu0 0.0
    %346 = vmatpush2.msra.mxu0 0.0
    %347 = vmatprep.subr.mxu0 0.0
    %348 = vmatpush2.msra.mxu0 0.0
    %349 = vmatprep.subr.mxu0 0.0
    %350 = vmatpush2.msra.mxu0 0.0
    %351 = vmatprep.subr.mxu0 0.0
    %352 = vmatpush2.msra.mxu0 0.0
    %353 = vmatprep.subr.mxu0 0.0
    %354 = vmatpush2.msra.mxu0 0.0
    %355 = vmatprep.subr.mxu0 0.0
    %356 = vmatpush2.msra.mxu0 0.0
    %357 = vmatprep.subr.mxu0 0.0
    %358 = vmatpush2.msra.mxu0 0.0
    %359 = vmatprep.subr.mxu0 0.0
    %360 = vmatpush2.msra.mxu0 0.0
    %361 = vmatprep.subr.mxu0 0.0
    %362 = vmatpush2.msra.mxu0 0.0
    %363 = vmatprep.subr.mxu0 0.0
    %364 = vmatpush2.msra.mxu0 0.0
    %365 = vmatprep.subr.mxu0 0.0
    %366 = vmatpush2.msra.mxu0 0.0
    %367 = vmatprep.mubr.f32.mxu0 0.0
    %368 = vmatmul.mubr.f32.gmra.mxu0 %v301
    %v369 = vpop.f32.mrf.mxu0
    %v370 = vadd.f32 %v292, %v369
    %v371 = vpop.f32.mrf.mxu0
    %v372 = vadd.f32 %v296, %v371
    %373 = vdwg.mxu0
    %v374 = vmul.f32 %v370, 0.25
    %v375 = vld [vmem:[%s2 + $0x20] sm:$0xff]
    %v376 = vld [vmem:[%s2 + $0x48] sm:$0xff]
    %v377 = vld [vmem:[%s2 + $0x70] sm:$0xff]
    %v378 = vld [vmem:[%s2 + $0x98] sm:$0xff]
    %v379 = vld [vmem:[%s2 + $0xc0] sm:$0xff]
    %v380 = vld [vmem:[%s2 + $0xe8] sm:$0xff]
    %v381 = vld [vmem:[%s2 + $0x110] sm:$0xff]
    %v382 = vld [vmem:[%s2 + $0x138] sm:$0xff]
    %v383 = vlaneseq
    %v384 = vshrl.u32 %v383, 7
    %v385 = vlaneseq
    %v386 = vand.u32 %v385, 127
    %v387 = vadd.s32 %v384, 2
    %vm388 = vcmp.eq.s32.totalorder %v386, %v387
    %v389 = vsub.s32 %v384, 2
    %vm390 = vcmp.eq.s32.totalorder %v386, %v389
    %vm391 = vmor %vm388, %vm390
    %v392 = vsel %vm391, 1.0, 0.0
    %394 = vrot.lane.b32.xlu0 %v370, 64
    %v395 = vpop.permute.xlu0 %394
    %vm396 = vcmask 31744
    %v398 = vsel %vm396, %v392, 0
    %vm400 = vcmask 1043456
    %v401 = vsel %vm400, %v395, 0
    %403 = vmatprep.subr.mxu0 0.0
    %404 = vmatpush1.msra.mxu0 0.0
    %405 = vmatprep.subr.mxu0 0.0
    %406 = vmatpush1.msra.mxu0 0.0
    %407 = vmatprep.subr.mxu0 0.0
    %408 = vmatpush1.msra.mxu0 0.0
    %409 = vmatprep.subr.mxu0 0.0
    %410 = vmatpush1.msra.mxu0 0.0
    %411 = vmatprep.subr.mxu0 0.0
    %412 = vmatpush1.msra.mxu0 0.0
    %413 = vmatprep.subr.mxu0 0.0
    %414 = vmatpush1.msra.mxu0 0.0
    %415 = vmatprep.subr.mxu0 0.0
    %416 = vmatpush1.msra.mxu0 0.0
    %417 = vmatprep.subr.mxu0 0.0
    %418 = vmatpush1.msra.mxu0 0.0
    %419 = vmatprep.subr.mxu0 0.0
    %420 = vmatpush1.msra.mxu0 0.0
    %421 = vmatprep.subr.mxu0 0.0
    %422 = vmatpush1.msra.mxu0 0.0
    %423 = vmatprep.subr.mxu0 0.0
    %424 = vmatpush1.msra.mxu0 0.0
    %425 = vmatprep.subr.mxu0 0.0
    %426 = vmatpush1.msra.mxu0 0.0
    %427 = vmatprep.subr.mxu0 0.0
    %428 = vmatpush1.msra.mxu0 0.0
    %429 = vmatprep.subr.mxu0 0.0
    %430 = vmatpush1.msra.mxu0 0.0
    %431 = vmatprep.subr.mxu0 0.0
    %432 = vmatpush1.msra.mxu0 0.0
    %433 = vmatprep.subr.mxu0 0.0
    %434 = vmatpush1.msra.mxu0 %v401
    %435 = vmatprep.subr.mxu0 0.0
    %436 = vmatpush2.msra.mxu0 0.0
    %437 = vmatprep.subr.mxu0 0.0
    %438 = vmatpush2.msra.mxu0 0.0
    %439 = vmatprep.subr.mxu0 0.0
    %440 = vmatpush2.msra.mxu0 0.0
    %441 = vmatprep.subr.mxu0 0.0
    %442 = vmatpush2.msra.mxu0 0.0
    %443 = vmatprep.subr.mxu0 0.0
    %444 = vmatpush2.msra.mxu0 0.0
    %445 = vmatprep.subr.mxu0 0.0
    %446 = vmatpush2.msra.mxu0 0.0
    %447 = vmatprep.subr.mxu0 0.0
    %448 = vmatpush2.msra.mxu0 0.0
    %449 = vmatprep.subr.mxu0 0.0
    %450 = vmatpush2.msra.mxu0 0.0
    %451 = vmatprep.subr.mxu0 0.0
    %452 = vmatpush2.msra.mxu0 0.0
    %453 = vmatprep.subr.mxu0 0.0
    %454 = vmatpush2.msra.mxu0 0.0
    %455 = vmatprep.subr.mxu0 0.0
    %456 = vmatpush2.msra.mxu0 0.0
    %457 = vmatprep.subr.mxu0 0.0
    %458 = vmatpush2.msra.mxu0 0.0
    %459 = vmatprep.subr.mxu0 0.0
    %460 = vmatpush2.msra.mxu0 0.0
    %461 = vmatprep.subr.mxu0 0.0
    %462 = vmatpush2.msra.mxu0 0.0
    %463 = vmatprep.subr.mxu0 0.0
    %464 = vmatpush2.msra.mxu0 0.0
    %465 = vmatprep.subr.mxu0 0.0
    %466 = vmatpush2.msra.mxu0 0.0
    %467 = vmatprep.mubr.f32.mxu0 0.0
    %468 = vmatmul.mubr.f32.gmra.mxu0 %v398
    %v469 = vpop.f32.mrf.mxu0
    %v470 = vadd.f32 0.0, %v469
    %v471 = vpop.f32.mrf.mxu0
    %472 = vdwg.mxu0
    %v474 = vsel %vm400, %v372, 0
    %476 = vmatprep.subr.mxu0 0.0
    %477 = vmatpush1.msra.mxu0 0.0
    %478 = vmatprep.subr.mxu0 0.0
    %479 = vmatpush1.msra.mxu0 0.0
    %480 = vmatprep.subr.mxu0 0.0
    %481 = vmatpush1.msra.mxu0 0.0
    %482 = vmatprep.subr.mxu0 0.0
    %483 = vmatpush1.msra.mxu0 0.0
    %484 = vmatprep.subr.mxu0 0.0
    %485 = vmatpush1.msra.mxu0 0.0
    %486 = vmatprep.subr.mxu0 0.0
    %487 = vmatpush1.msra.mxu0 0.0
    %488 = vmatprep.subr.mxu0 0.0
    %489 = vmatpush1.msra.mxu0 0.0
    %490 = vmatprep.subr.mxu0 0.0
    %491 = vmatpush1.msra.mxu0 0.0
    %492 = vmatprep.subr.mxu0 0.0
    %493 = vmatpush1.msra.mxu0 0.0
    %494 = vmatprep.subr.mxu0 0.0
    %495 = vmatpush1.msra.mxu0 0.0
    %496 = vmatprep.subr.mxu0 0.0
    %497 = vmatpush1.msra.mxu0 0.0
    %498 = vmatprep.subr.mxu0 0.0
    %499 = vmatpush1.msra.mxu0 0.0
    %500 = vmatprep.subr.mxu0 0.0
    %501 = vmatpush1.msra.mxu0 0.0
    %502 = vmatprep.subr.mxu0 0.0
    %503 = vmatpush1.msra.mxu0 0.0
    %504 = vmatprep.subr.mxu0 0.0
    %505 = vmatpush1.msra.mxu0 0.0
    %506 = vmatprep.subr.mxu0 0.0
    %507 = vmatpush1.msra.mxu0 %v474
    %508 = vmatprep.subr.mxu0 0.0
    %509 = vmatpush2.msra.mxu0 0.0
    %510 = vmatprep.subr.mxu0 0.0
    %511 = vmatpush2.msra.mxu0 0.0
    %512 = vmatprep.subr.mxu0 0.0
    %513 = vmatpush2.msra.mxu0 0.0
    %514 = vmatprep.subr.mxu0 0.0
    %515 = vmatpush2.msra.mxu0 0.0
    %516 = vmatprep.subr.mxu0 0.0
    %517 = vmatpush2.msra.mxu0 0.0
    %518 = vmatprep.subr.mxu0 0.0
    %519 = vmatpush2.msra.mxu0 0.0
    %520 = vmatprep.subr.mxu0 0.0
    %521 = vmatpush2.msra.mxu0 0.0
    %522 = vmatprep.subr.mxu0 0.0
    %523 = vmatpush2.msra.mxu0 0.0
    %524 = vmatprep.subr.mxu0 0.0
    %525 = vmatpush2.msra.mxu0 0.0
    %526 = vmatprep.subr.mxu0 0.0
    %527 = vmatpush2.msra.mxu0 0.0
    %528 = vmatprep.subr.mxu0 0.0
    %529 = vmatpush2.msra.mxu0 0.0
    %530 = vmatprep.subr.mxu0 0.0
    %531 = vmatpush2.msra.mxu0 0.0
    %532 = vmatprep.subr.mxu0 0.0
    %533 = vmatpush2.msra.mxu0 0.0
    %534 = vmatprep.subr.mxu0 0.0
    %535 = vmatpush2.msra.mxu0 0.0
    %536 = vmatprep.subr.mxu0 0.0
    %537 = vmatpush2.msra.mxu0 0.0
    %538 = vmatprep.subr.mxu0 0.0
    %539 = vmatpush2.msra.mxu0 0.0
    %540 = vmatprep.mubr.f32.mxu0 0.0
    %541 = vmatmul.mubr.f32.gmra.mxu0 %v398
    %v542 = vpop.f32.mrf.mxu0
    %v543 = vadd.f32 0.0, %v542
    %v544 = vpop.f32.mrf.mxu0
    %545 = vdwg.mxu0
    %v547 = vmul.f32 %v374, %v395
    %v549 = vsel %vm299, %v547, 0
    %551 = vmatprep.subr.mxu0 0.0
    %552 = vmatpush1.msra.mxu0 0.0
    %553 = vmatprep.subr.mxu0 0.0
    %554 = vmatpush1.msra.mxu0 0.0
    %555 = vmatprep.subr.mxu0 0.0
    %556 = vmatpush1.msra.mxu0 0.0
    %557 = vmatprep.subr.mxu0 0.0
    %558 = vmatpush1.msra.mxu0 0.0
    %559 = vmatprep.subr.mxu0 0.0
    %560 = vmatpush1.msra.mxu0 0.0
    %561 = vmatprep.subr.mxu0 0.0
    %562 = vmatpush1.msra.mxu0 0.0
    %563 = vmatprep.subr.mxu0 0.0
    %564 = vmatpush1.msra.mxu0 0.0
    %565 = vmatprep.subr.mxu0 0.0
    %566 = vmatpush1.msra.mxu0 0.0
    %567 = vmatprep.subr.mxu0 0.0
    %568 = vmatpush1.msra.mxu0 %v382
    %569 = vmatprep.subr.mxu0 0.0
    %570 = vmatpush1.msra.mxu0 %v381
    %571 = vmatprep.subr.mxu0 0.0
    %572 = vmatpush1.msra.mxu0 %v380
    %573 = vmatprep.subr.mxu0 0.0
    %574 = vmatpush1.msra.mxu0 %v379
    %575 = vmatprep.subr.mxu0 0.0
    %576 = vmatpush1.msra.mxu0 %v378
    %577 = vmatprep.subr.mxu0 0.0
    %578 = vmatpush1.msra.mxu0 %v377
    %579 = vmatprep.subr.mxu0 0.0
    %580 = vmatpush1.msra.mxu0 %v376
    %581 = vmatprep.subr.mxu0 0.0
    %582 = vmatpush1.msra.mxu0 %v375
    %583 = vmatprep.subr.mxu0 0.0
    %584 = vmatpush2.msra.mxu0 0.0
    %585 = vmatprep.subr.mxu0 0.0
    %586 = vmatpush2.msra.mxu0 0.0
    %587 = vmatprep.subr.mxu0 0.0
    %588 = vmatpush2.msra.mxu0 0.0
    %589 = vmatprep.subr.mxu0 0.0
    %590 = vmatpush2.msra.mxu0 0.0
    %591 = vmatprep.subr.mxu0 0.0
    %592 = vmatpush2.msra.mxu0 0.0
    %593 = vmatprep.subr.mxu0 0.0
    %594 = vmatpush2.msra.mxu0 0.0
    %595 = vmatprep.subr.mxu0 0.0
    %596 = vmatpush2.msra.mxu0 0.0
    %597 = vmatprep.subr.mxu0 0.0
    %598 = vmatpush2.msra.mxu0 0.0
    %599 = vmatprep.subr.mxu0 0.0
    %600 = vmatpush2.msra.mxu0 0.0
    %601 = vmatprep.subr.mxu0 0.0
    %602 = vmatpush2.msra.mxu0 0.0
    %603 = vmatprep.subr.mxu0 0.0
    %604 = vmatpush2.msra.mxu0 0.0
    %605 = vmatprep.subr.mxu0 0.0
    %606 = vmatpush2.msra.mxu0 0.0
    %607 = vmatprep.subr.mxu0 0.0
    %608 = vmatpush2.msra.mxu0 0.0
    %609 = vmatprep.subr.mxu0 0.0
    %610 = vmatpush2.msra.mxu0 0.0
    %611 = vmatprep.subr.mxu0 0.0
    %612 = vmatpush2.msra.mxu0 0.0
    %613 = vmatprep.subr.mxu0 0.0
    %614 = vmatpush2.msra.mxu0 0.0
    %615 = vmatprep.mubr.f32.mxu0 0.0
    %616 = vmatmul.mubr.f32.gmra.mxu0 %v549
    %v617 = vpop.f32.mrf.mxu0
    %v618 = vadd.f32 0.0, %v617
    %v619 = vpop.f32.mrf.mxu0
    %620 = vdwg.mxu0
    %v621 = vmul.f32 %v374, %v470
    %v623 = vsel %vm299, %v621, 0
    %625 = vmatprep.subr.mxu0 0.0
    %626 = vmatpush1.msra.mxu0 0.0
    %627 = vmatprep.subr.mxu0 0.0
    %628 = vmatpush1.msra.mxu0 0.0
    %629 = vmatprep.subr.mxu0 0.0
    %630 = vmatpush1.msra.mxu0 0.0
    %631 = vmatprep.subr.mxu0 0.0
    %632 = vmatpush1.msra.mxu0 0.0
    %633 = vmatprep.subr.mxu0 0.0
    %634 = vmatpush1.msra.mxu0 0.0
    %635 = vmatprep.subr.mxu0 0.0
    %636 = vmatpush1.msra.mxu0 0.0
    %637 = vmatprep.subr.mxu0 0.0
    %638 = vmatpush1.msra.mxu0 0.0
    %639 = vmatprep.subr.mxu0 0.0
    %640 = vmatpush1.msra.mxu0 0.0
    %641 = vmatprep.subr.mxu0 0.0
    %642 = vmatpush1.msra.mxu0 %v382
    %643 = vmatprep.subr.mxu0 0.0
    %644 = vmatpush1.msra.mxu0 %v381
    %645 = vmatprep.subr.mxu0 0.0
    %646 = vmatpush1.msra.mxu0 %v380
    %647 = vmatprep.subr.mxu0 0.0
    %648 = vmatpush1.msra.mxu0 %v379
    %649 = vmatprep.subr.mxu0 0.0
    %650 = vmatpush1.msra.mxu0 %v378
    %651 = vmatprep.subr.mxu0 0.0
    %652 = vmatpush1.msra.mxu0 %v377
    %653 = vmatprep.subr.mxu0 0.0
    %654 = vmatpush1.msra.mxu0 %v376
    %655 = vmatprep.subr.mxu0 0.0
    %656 = vmatpush1.msra.mxu0 %v375
    %657 = vmatprep.subr.mxu0 0.0
    %658 = vmatpush2.msra.mxu0 0.0
    %659 = vmatprep.subr.mxu0 0.0
    %660 = vmatpush2.msra.mxu0 0.0
    %661 = vmatprep.subr.mxu0 0.0
    %662 = vmatpush2.msra.mxu0 0.0
    %663 = vmatprep.subr.mxu0 0.0
    %664 = vmatpush2.msra.mxu0 0.0
    %665 = vmatprep.subr.mxu0 0.0
    %666 = vmatpush2.msra.mxu0 0.0
    %667 = vmatprep.subr.mxu0 0.0
    %668 = vmatpush2.msra.mxu0 0.0
    %669 = vmatprep.subr.mxu0 0.0
    %670 = vmatpush2.msra.mxu0 0.0
    %671 = vmatprep.subr.mxu0 0.0
    %672 = vmatpush2.msra.mxu0 0.0
    %673 = vmatprep.subr.mxu0 0.0
    %674 = vmatpush2.msra.mxu0 0.0
    %675 = vmatprep.subr.mxu0 0.0
    %676 = vmatpush2.msra.mxu0 0.0
    %677 = vmatprep.subr.mxu0 0.0
    %678 = vmatpush2.msra.mxu0 0.0
    %679 = vmatprep.subr.mxu0 0.0
    %680 = vmatpush2.msra.mxu0 0.0
    %681 = vmatprep.subr.mxu0 0.0
    %682 = vmatpush2.msra.mxu0 0.0
    %683 = vmatprep.subr.mxu0 0.0
    %684 = vmatpush2.msra.mxu0 0.0
    %685 = vmatprep.subr.mxu0 0.0
    %686 = vmatpush2.msra.mxu0 0.0
    %687 = vmatprep.subr.mxu0 0.0
    %688 = vmatpush2.msra.mxu0 0.0
    %689 = vmatprep.mubr.f32.mxu0 0.0
    %690 = vmatmul.mubr.f32.gmra.mxu0 %v623
    %v691 = vpop.f32.mrf.mxu0
    %v692 = vadd.f32 0.0, %v691
    %v693 = vpop.f32.mrf.mxu0
    %694 = vdwg.mxu0
    %v695 = vmax.f32 %v618, %v692
    %v696 = vsub.f32 %v618, %v695
    %v697 = vmul.f32 %v696, 1.442695
    %v698 = vpow.pop %v697
    %v699 = vsub.f32 %v692, %v695
    %v700 = vmul.f32 %v699, 1.442695
    %v701 = vpow.pop %v700
    %v702 = vmul.f32 %v698, %v372
    %v703 = vmul.f32 %v701, %v543
    %v704 = vadd.f32 %v702, %v703
    %v705 = vadd.f32 %v698, %v701
    %v706 = vrcp.pop %v705
    %v707 = vmul.f32 %v704, %v706
    %v708 = vld [vmem:[%s2 + $0x10] sm:$0xff]
    %v709 = vld [vmem:[%s2 + $0x38] sm:$0xff]
    %v710 = vld [vmem:[%s2 + $0x60] sm:$0xff]
    %v711 = vld [vmem:[%s2 + $0x88] sm:$0xff]
    %v712 = vld [vmem:[%s2 + $0xb0] sm:$0xff]
    %v713 = vld [vmem:[%s2 + $0xd8] sm:$0xff]
    %v714 = vld [vmem:[%s2 + $0x100] sm:$0xff]
    %v715 = vld [vmem:[%s2 + $0x128] sm:$0xff]
    %v716 = vld [vmem:[%s5 + $0x5] ss:$0 sm:$0xff]
    %v718 = vsel %vm299, %v707, 0
    %720 = vmatprep.subr.mxu0 0.0
    %721 = vmatpush1.msra.mxu0 0.0
    %722 = vmatprep.subr.mxu0 0.0
    %723 = vmatpush1.msra.mxu0 0.0
    %724 = vmatprep.subr.mxu0 0.0
    %725 = vmatpush1.msra.mxu0 0.0
    %726 = vmatprep.subr.mxu0 0.0
    %727 = vmatpush1.msra.mxu0 0.0
    %728 = vmatprep.subr.mxu0 0.0
    %729 = vmatpush1.msra.mxu0 0.0
    %730 = vmatprep.subr.mxu0 0.0
    %731 = vmatpush1.msra.mxu0 0.0
    %732 = vmatprep.subr.mxu0 0.0
    %733 = vmatpush1.msra.mxu0 0.0
    %734 = vmatprep.subr.mxu0 0.0
    %735 = vmatpush1.msra.mxu0 0.0
    %736 = vmatprep.subr.mxu0 0.0
    %737 = vmatpush1.msra.mxu0 %v715
    %738 = vmatprep.subr.mxu0 0.0
    %739 = vmatpush1.msra.mxu0 %v714
    %740 = vmatprep.subr.mxu0 0.0
    %741 = vmatpush1.msra.mxu0 %v713
    %742 = vmatprep.subr.mxu0 0.0
    %743 = vmatpush1.msra.mxu0 %v712
    %744 = vmatprep.subr.mxu0 0.0
    %745 = vmatpush1.msra.mxu0 %v711
    %746 = vmatprep.subr.mxu0 0.0
    %747 = vmatpush1.msra.mxu0 %v710
    %748 = vmatprep.subr.mxu0 0.0
    %749 = vmatpush1.msra.mxu0 %v709
    %750 = vmatprep.subr.mxu0 0.0
    %751 = vmatpush1.msra.mxu0 %v708
    %752 = vmatprep.subr.mxu0 0.0
    %753 = vmatpush2.msra.mxu0 0.0
    %754 = vmatprep.subr.mxu0 0.0
    %755 = vmatpush2.msra.mxu0 0.0
    %756 = vmatprep.subr.mxu0 0.0
    %757 = vmatpush2.msra.mxu0 0.0
    %758 = vmatprep.subr.mxu0 0.0
    %759 = vmatpush2.msra.mxu0 0.0
    %760 = vmatprep.subr.mxu0 0.0
    %761 = vmatpush2.msra.mxu0 0.0
    %762 = vmatprep.subr.mxu0 0.0
    %763 = vmatpush2.msra.mxu0 0.0
    %764 = vmatprep.subr.mxu0 0.0
    %765 = vmatpush2.msra.mxu0 0.0
    %766 = vmatprep.subr.mxu0 0.0
    %767 = vmatpush2.msra.mxu0 0.0
    %768 = vmatprep.subr.mxu0 0.0
    %769 = vmatpush2.msra.mxu0 0.0
    %770 = vmatprep.subr.mxu0 0.0
    %771 = vmatpush2.msra.mxu0 0.0
    %772 = vmatprep.subr.mxu0 0.0
    %773 = vmatpush2.msra.mxu0 0.0
    %774 = vmatprep.subr.mxu0 0.0
    %775 = vmatpush2.msra.mxu0 0.0
    %776 = vmatprep.subr.mxu0 0.0
    %777 = vmatpush2.msra.mxu0 0.0
    %778 = vmatprep.subr.mxu0 0.0
    %779 = vmatpush2.msra.mxu0 0.0
    %780 = vmatprep.subr.mxu0 0.0
    %781 = vmatpush2.msra.mxu0 0.0
    %782 = vmatprep.subr.mxu0 0.0
    %783 = vmatpush2.msra.mxu0 0.0
    %784 = vmatprep.mubr.f32.mxu0 0.0
    %785 = vmatmul.mubr.f32.gmra.mxu0 %v718
    %v786 = vpop.f32.mrf.mxu0
    %v787 = vadd.f32 %v716, %v786
    %v788 = vpop.f32.mrf.mxu0
    %789 = vdwg.mxu0
    %v790 = vadd.f32 %v269, %v787
    %v791 = vld [vmem:[%s5 + $0x6] ss:$0 sm:$0xff]
    %v792 = vld [vmem:[%s5 + $0x7] ss:$0 sm:$0xff]
    %v793 = vsel %vm253, %v790, 0.0
    %794 = vadd.xlane.f32.xlu0 %v793
    %v795 = vpop.xlane.xlu0 %794
    %v796 = vmul.f32 %v795, %v257
    %v797 = vsub.f32 %v790, %v796
    %v798 = vmul.f32 %v797, %v797
    %v799 = vsel %vm253, %v798, 0.0
    %800 = vadd.xlane.f32.xlu0 %v799
    %v801 = vpop.xlane.xlu0 %800
    %v802 = vmul.f32 %v801, %v257
    %v803 = vadd.f32 %v802, 1e-05
    %v804 = vrsqrt.pop %v803
    %v805 = vmul.f32 %v797, %v804
    %v806 = vmul.f32 %v805, %v791
    %v807 = vadd.f32 %v806, %v792
    %v808 = vld [vmem:[%s2 + $0x18] sm:$0xff]
    %v809 = vld [vmem:[%s2 + $0x40] sm:$0xff]
    %v810 = vld [vmem:[%s2 + $0x68] sm:$0xff]
    %v811 = vld [vmem:[%s2 + $0x90] sm:$0xff]
    %v812 = vld [vmem:[%s2 + $0xb8] sm:$0xff]
    %v813 = vld [vmem:[%s2 + $0xe0] sm:$0xff]
    %v814 = vld [vmem:[%s2 + $0x108] sm:$0xff]
    %v815 = vld [vmem:[%s2 + $0x130] sm:$0xff]
    %v816 = vld [vmem:[%s5 + $0x10] ss:$0 sm:$0xff]
    %v818 = vsel %vm299, %v807, 0
    %820 = vmatprep.subr.mxu0 0.0
    %821 = vmatpush1.msra.mxu0 0.0
    %822 = vmatprep.subr.mxu0 0.0
    %823 = vmatpush1.msra.mxu0 0.0
    %824 = vmatprep.subr.mxu0 0.0
    %825 = vmatpush1.msra.mxu0 0.0
    %826 = vmatprep.subr.mxu0 0.0
    %827 = vmatpush1.msra.mxu0 0.0
    %828 = vmatprep.subr.mxu0 0.0
    %829 = vmatpush1.msra.mxu0 0.0
    %830 = vmatprep.subr.mxu0 0.0
    %831 = vmatpush1.msra.mxu0 0.0
    %832 = vmatprep.subr.mxu0 0.0
    %833 = vmatpush1.msra.mxu0 0.0
    %834 = vmatprep.subr.mxu0 0.0
    %835 = vmatpush1.msra.mxu0 0.0
    %836 = vmatprep.subr.mxu0 0.0
    %837 = vmatpush1.msra.mxu0 %v815
    %838 = vmatprep.subr.mxu0 0.0
    %839 = vmatpush1.msra.mxu0 %v814
    %840 = vmatprep.subr.mxu0 0.0
    %841 = vmatpush1.msra.mxu0 %v813
    %842 = vmatprep.subr.mxu0 0.0
    %843 = vmatpush1.msra.mxu0 %v812
    %844 = vmatprep.subr.mxu0 0.0
    %845 = vmatpush1.msra.mxu0 %v811
    %846 = vmatprep.subr.mxu0 0.0
    %847 = vmatpush1.msra.mxu0 %v810
    %848 = vmatprep.subr.mxu0 0.0
    %849 = vmatpush1.msra.mxu0 %v809
    %850 = vmatprep.subr.mxu0 0.0
    %851 = vmatpush1.msra.mxu0 %v808
    %852 = vmatprep.subr.mxu0 0.0
    %853 = vmatpush2.msra.mxu0 0.0
    %854 = vmatprep.subr.mxu0 0.0
    %855 = vmatpush2.msra.mxu0 0.0
    %856 = vmatprep.subr.mxu0 0.0
    %857 = vmatpush2.msra.mxu0 0.0
    %858 = vmatprep.subr.mxu0 0.0
    %859 = vmatpush2.msra.mxu0 0.0
    %860 = vmatprep.subr.mxu0 0.0
    %861 = vmatpush2.msra.mxu0 0.0
    %862 = vmatprep.subr.mxu0 0.0
    %863 = vmatpush2.msra.mxu0 0.0
    %864 = vmatprep.subr.mxu0 0.0
    %865 = vmatpush2.msra.mxu0 0.0
    %866 = vmatprep.subr.mxu0 0.0
    %867 = vmatpush2.msra.mxu0 0.0
    %868 = vmatprep.subr.mxu0 0.0
    %869 = vmatpush2.msra.mxu0 0.0
    %870 = vmatprep.subr.mxu0 0.0
    %871 = vmatpush2.msra.mxu0 0.0
    %872 = vmatprep.subr.mxu0 0.0
    %873 = vmatpush2.msra.mxu0 0.0
    %874 = vmatprep.subr.mxu0 0.0
    %875 = vmatpush2.msra.mxu0 0.0
    %876 = vmatprep.subr.mxu0 0.0
    %877 = vmatpush2.msra.mxu0 0.0
    %878 = vmatprep.subr.mxu0 0.0
    %879 = vmatpush2.msra.mxu0 0.0
    %880 = vmatprep.subr.mxu0 0.0
    %881 = vmatpush2.msra.mxu0 0.0
    %882 = vmatprep.subr.mxu0 0.0
    %883 = vmatpush2.msra.mxu0 0.0
    %884 = vmatprep.mubr.f32.mxu0 0.0
    %885 = vmatmul.mubr.f32.gmra.mxu0 %v818
    %v886 = vpop.f32.mrf.mxu0
    %v887 = vadd.f32 %v816, %v886
    %v888 = vpop.f32.mrf.mxu0
    %889 = vdwg.mxu0
    %v890 = vmax.f32 %v887, 0.0
    %v891 = vld [vmem:[#allocation2] sm:$0xff]
    %v892 = vld [vmem:[#allocation2 + $0x20] sm:$0xff]
    %v893 = vld [vmem:[#allocation2 + $0x40] sm:$0xff]
    %v894 = vld [vmem:[#allocation2 + $0x60] sm:$0xff]
    %v895 = vld [vmem:[#allocation2 + $0x80] sm:$0xff]
    %v896 = vld [vmem:[#allocation2 + $0xa0] sm:$0xff]
    %v897 = vld [vmem:[#allocation2 + $0xc0] sm:$0xff]
    %v898 = vld [vmem:[#allocation2 + $0xe0] sm:$0xff]
    %v899 = vld [vmem:[#allocation2 + $0x100] sm:$0xff]
    %v900 = vld [vmem:[#allocation2 + $0x120] sm:$0xff]
    %v901 = vld [vmem:[#allocation2 + $0x140] sm:$0xff]
    %v902 = vld [vmem:[#allocation2 + $0x160] sm:$0xff]
    %v903 = vld [vmem:[#allocation2 + $0x180] sm:$0xff]
    %v904 = vld [vmem:[#allocation2 + $0x1a0] sm:$0xff]
    %v905 = vld [vmem:[#allocation2 + $0x1c0] sm:$0xff]
    %v906 = vld [vmem:[#allocation2 + $0x1e0] sm:$0xff]
    %v907 = vld [vmem:[%s5 + $0x11] ss:$0 sm:$0xff]
    %908 = vmatprep.subr.mxu0 0.0
    %909 = vmatpush1.msra.mxu0 %v906
    %910 = vmatprep.subr.mxu0 0.0
    %911 = vmatpush1.msra.mxu0 %v905
    %912 = vmatprep.subr.mxu0 0.0
    %913 = vmatpush1.msra.mxu0 %v904
    %914 = vmatprep.subr.mxu0 0.0
    %915 = vmatpush1.msra.mxu0 %v903
    %916 = vmatprep.subr.mxu0 0.0
    %917 = vmatpush1.msra.mxu0 %v902
    %918 = vmatprep.subr.mxu0 0.0
    %919 = vmatpush1.msra.mxu0 %v901
    %920 = vmatprep.subr.mxu0 0.0
    %921 = vmatpush1.msra.mxu0 %v900
    %922 = vmatprep.subr.mxu0 0.0
    %923 = vmatpush1.msra.mxu0 %v899
    %924 = vmatprep.subr.mxu0 0.0
    %925 = vmatpush1.msra.mxu0 %v898
    %926 = vmatprep.subr.mxu0 0.0
    %927 = vmatpush1.msra.mxu0 %v897
    %928 = vmatprep.subr.mxu0 0.0
    %929 = vmatpush1.msra.mxu0 %v896
    %930 = vmatprep.subr.mxu0 0.0
    %931 = vmatpush1.msra.mxu0 %v895
    %932 = vmatprep.subr.mxu0 0.0
    %933 = vmatpush1.msra.mxu0 %v894
    %934 = vmatprep.subr.mxu0 0.0
    %935 = vmatpush1.msra.mxu0 %v893
    %936 = vmatprep.subr.mxu0 0.0
    %937 = vmatpush1.msra.mxu0 %v892
    %938 = vmatprep.subr.mxu0 0.0
    %939 = vmatpush1.msra.mxu0 %v891
    %940 = vmatprep.subr.mxu0 0.0
    %941 = vmatpush2.msra.mxu0 0.0
    %942 = vmatprep.subr.mxu0 0.0
    %943 = vmatpush2.msra.mxu0 0.0
    %944 = vmatprep.subr.mxu0 0.0
    %945 = vmatpush2.msra.mxu0 0.0
    %946 = vmatprep.subr.mxu0 0.0
    %947 = vmatpush2.msra.mxu0 0.0
    %948 = vmatprep.subr.mxu0 0.0
    %949 = vmatpush2.msra.mxu0 0.0
    %950 = vmatprep.subr.mxu0 0.0
    %951 = vmatpush2.msra.mxu0 0.0
    %952 = vmatprep.subr.mxu0 0.0
    %953 = vmatpush2.msra.mxu0 0.0
    %954 = vmatprep.subr.mxu0 0.0
    %955 = vmatpush2.msra.mxu0 0.0
    %956 = vmatprep.subr.mxu0 0.0
    %957 = vmatpush2.msra.mxu0 0.0
    %958 = vmatprep.subr.mxu0 0.0
    %959 = vmatpush2.msra.mxu0 0.0
    %960 = vmatprep.subr.mxu0 0.0
    %961 = vmatpush2.msra.mxu0 0.0
    %962 = vmatprep.subr.mxu0 0.0
    %963 = vmatpush2.msra.mxu0 0.0
    %964 = vmatprep.subr.mxu0 0.0
    %965 = vmatpush2.msra.mxu0 0.0
    %966 = vmatprep.subr.mxu0 0.0
    %967 = vmatpush2.msra.mxu0 0.0
    %968 = vmatprep.subr.mxu0 0.0
    %969 = vmatpush2.msra.mxu0 0.0
    %970 = vmatprep.subr.mxu0 0.0
    %971 = vmatpush2.msra.mxu0 0.0
    %972 = vmatprep.mubr.f32.mxu0 0.0
    %973 = vmatmul.mubr.f32.gmra.mxu0 %v890
    %v974 = vpop.f32.mrf.mxu0
    %v975 = vadd.f32 %v907, %v974
    %v976 = vpop.f32.mrf.mxu0
    %977 = vdwg.mxu0
    %v978 = vadd.f32 %v807, %v975
    %v979 = vld [vmem:[%s5 + $0x12] ss:$0 sm:$0xff]
    %v980 = vld [vmem:[%s5 + $0x13] ss:$0 sm:$0xff]
    %v981 = vsel %vm253, %v978, 0.0
    %982 = vadd.xlane.f32.xlu0 %v981
    %v983 = vpop.xlane.xlu0 %982
    %v984 = vmul.f32 %v983, %v257
    %v985 = vsub.f32 %v978, %v984
    %v986 = vmul.f32 %v985, %v985
    %v987 = vsel %vm253, %v986, 0.0
    %988 = vadd.xlane.f32.xlu0 %v987
    %v989 = vpop.xlane.xlu0 %988
    %v990 = vmul.f32 %v989, %v257
    %v991 = vadd.f32 %v990, 1e-05
    %v992 = vrsqrt.pop %v991
    %v993 = vmul.f32 %v985, %v992
    %v994 = vmul.f32 %v993, %v979
    %v995 = vadd.f32 %v994, %v980
    %v996 = vmul.u32 %v384, 2
    %vm997 = vcmp.eq.s32.totalorder %v386, %v996
    %v998 = vsel %vm997, 1.0, 0.0
    %v999 = vadd.s32 %v996, 1
    %vm1000 = vcmp.eq.s32.totalorder %v386, %v999
    %v1001 = vsel %vm1000, 1.0, 0.0
    %v1003 = vsel %vm396, %v998, 0
    %v1006 = vsel %vm400, %v995, 0
    %1008 = vmatprep.subr.mxu0 0.0
    %1009 = vmatpush1.msra.mxu0 0.0
    %1010 = vmatprep.subr.mxu0 0.0
    %1011 = vmatpush1.msra.mxu0 0.0
    %1012 = vmatprep.subr.mxu0 0.0
    %1013 = vmatpush1.msra.mxu0 0.0
    %1014 = vmatprep.subr.mxu0 0.0
    %1015 = vmatpush1.msra.mxu0 0.0
    %1016 = vmatprep.subr.mxu0 0.0
    %1017 = vmatpush1.msra.mxu0 0.0
    %1018 = vmatprep.subr.mxu0 0.0
    %1019 = vmatpush1.msra.mxu0 0.0
    %1020 = vmatprep.subr.mxu0 0.0
    %1021 = vmatpush1.msra.mxu0 0.0
    %1022 = vmatprep.subr.mxu0 0.0
    %1023 = vmatpush1.msra.mxu0 0.0
    %1024 = vmatprep.subr.mxu0 0.0
    %1025 = vmatpush1.msra.mxu0 0.0
    %1026 = vmatprep.subr.mxu0 0.0
    %1027 = vmatpush1.msra.mxu0 0.0
    %1028 = vmatprep.subr.mxu0 0.0
    %1029 = vmatpush1.msra.mxu0 0.0
    %1030 = vmatprep.subr.mxu0 0.0
    %1031 = vmatpush1.msra.mxu0 0.0
    %1032 = vmatprep.subr.mxu0 0.0
    %1033 = vmatpush1.msra.mxu0 0.0
    %1034 = vmatprep.subr.mxu0 0.0
    %1035 = vmatpush1.msra.mxu0 0.0
    %1036 = vmatprep.subr.mxu0 0.0
    %1037 = vmatpush1.msra.mxu0 0.0
    %1038 = vmatprep.subr.mxu0 0.0
    %1039 = vmatpush1.msra.mxu0 %v1006
    %1040 = vmatprep.subr.mxu0 0.0
    %1041 = vmatpush2.msra.mxu0 0.0
    %1042 = vmatprep.subr.mxu0 0.0
    %1043 = vmatpush2.msra.mxu0 0.0
    %1044 = vmatprep.subr.mxu0 0.0
    %1045 = vmatpush2.msra.mxu0 0.0
    %1046 = vmatprep.subr.mxu0 0.0
    %1047 = vmatpush2.msra.mxu0 0.0
    %1048 = vmatprep.subr.mxu0 0.0
    %1049 = vmatpush2.msra.mxu0 0.0
    %1050 = vmatprep.subr.mxu0 0.0
    %1051 = vmatpush2.msra.mxu0 0.0
    %1052 = vmatprep.subr.mxu0 0.0
    %1053 = vmatpush2.msra.mxu0 0.0
    %1054 = vmatprep.subr.mxu0 0.0
    %1055 = vmatpush2.msra.mxu0 0.0
    %1056 = vmatprep.subr.mxu0 0.0
    %1057 = vmatpush2.msra.mxu0 0.0
    %1058 = vmatprep.subr.mxu0 0.0
    %1059 = vmatpush2.msra.mxu0 0.0
    %1060 = vmatprep.subr.mxu0 0.0
    %1061 = vmatpush2.msra.mxu0 0.0
    %1062 = vmatprep.subr.mxu0 0.0
    %1063 = vmatpush2.msra.mxu0 0.0
    %1064 = vmatprep.subr.mxu0 0.0
    %1065 = vmatpush2.msra.mxu0 0.0
    %1066 = vmatprep.subr.mxu0 0.0
    %1067 = vmatpush2.msra.mxu0 0.0
    %1068 = vmatprep.subr.mxu0 0.0
    %1069 = vmatpush2.msra.mxu0 0.0
    %1070 = vmatprep.subr.mxu0 0.0
    %1071 = vmatpush2.msra.mxu0 0.0
    %1072 = vmatprep.mubr.f32.mxu0 0.0
    %1073 = vmatmul.mubr.f32.gmra.mxu0 %v1003
    %v1074 = vpop.f32.mrf.mxu0
    %v1075 = vadd.f32 0.0, %v1074
    %v1076 = vpop.f32.mrf.mxu0
    %1077 = vdwg.mxu0
    %v1079 = vsel %vm396, %v1001, 0
    %1081 = vmatprep.subr.mxu0 0.0
    %1082 = vmatpush1.msra.mxu0 0.0
    %1083 = vmatprep.subr.mxu0 0.0
    %1084 = vmatpush1.msra.mxu0 0.0
    %1085 = vmatprep.subr.mxu0 0.0
    %1086 = vmatpush1.msra.mxu0 0.0
    %1087 = vmatprep.subr.mxu0 0.0
    %1088 = vmatpush1.msra.mxu0 0.0
    %1089 = vmatprep.subr.mxu0 0.0
    %1090 = vmatpush1.msra.mxu0 0.0
    %1091 = vmatprep.subr.mxu0 0.0
    %1092 = vmatpush1.msra.mxu0 0.0
    %1093 = vmatprep.subr.mxu0 0.0
    %1094 = vmatpush1.msra.mxu0 0.0
    %1095 = vmatprep.subr.mxu0 0.0
    %1096 = vmatpush1.msra.mxu0 0.0
    %1097 = vmatprep.subr.mxu0 0.0
    %1098 = vmatpush1.msra.mxu0 0.0
    %1099 = vmatprep.subr.mxu0 0.0
    %1100 = vmatpush1.msra.mxu0 0.0
    %1101 = vmatprep.subr.mxu0 0.0
    %1102 = vmatpush1.msra.mxu0 0.0
    %1103 = vmatprep.subr.mxu0 0.0
    %1104 = vmatpush1.msra.mxu0 0.0
    %1105 = vmatprep.subr.mxu0 0.0
    %1106 = vmatpush1.msra.mxu0 0.0
    %1107 = vmatprep.subr.mxu0 0.0
    %1108 = vmatpush1.msra.mxu0 0.0
    %1109 = vmatprep.subr.mxu0 0.0
    %1110 = vmatpush1.msra.mxu0 0.0
    %1111 = vmatprep.subr.mxu0 0.0
    %1112 = vmatpush1.msra.mxu0 %v1006
    %1113 = vmatprep.subr.mxu0 0.0
    %1114 = vmatpush2.msra.mxu0 0.0
    %1115 = vmatprep.subr.mxu0 0.0
    %1116 = vmatpush2.msra.mxu0 0.0
    %1117 = vmatprep.subr.mxu0 0.0
    %1118 = vmatpush2.msra.mxu0 0.0
    %1119 = vmatprep.subr.mxu0 0.0
    %1120 = vmatpush2.msra.mxu0 0.0
    %1121 = vmatprep.subr.mxu0 0.0
    %1122 = vmatpush2.msra.mxu0 0.0
    %1123 = vmatprep.subr.mxu0 0.0
    %1124 = vmatpush2.msra.mxu0 0.0
    %1125 = vmatprep.subr.mxu0 0.0
    %1126 = vmatpush2.msra.mxu0 0.0
    %1127 = vmatprep.subr.mxu0 0.0
    %1128 = vmatpush2.msra.mxu0 0.0
    %1129 = vmatprep.subr.mxu0 0.0
    %1130 = vmatpush2.msra.mxu0 0.0
    %1131 = vmatprep.subr.mxu0 0.0
    %1132 = vmatpush2.msra.mxu0 0.0
    %1133 = vmatprep.subr.mxu0 0.0
    %1134 = vmatpush2.msra.mxu0 0.0
    %1135 = vmatprep.subr.mxu0 0.0
    %1136 = vmatpush2.msra.mxu0 0.0
    %1137 = vmatprep.subr.mxu0 0.0
    %1138 = vmatpush2.msra.mxu0 0.0
    %1139 = vmatprep.subr.mxu0 0.0
    %1140 = vmatpush2.msra.mxu0 0.0
    %1141 = vmatprep.subr.mxu0 0.0
    %1142 = vmatpush2.msra.mxu0 0.0
    %1143 = vmatprep.subr.mxu0 0.0
    %1144 = vmatpush2.msra.mxu0 0.0
    %1145 = vmatprep.mubr.f32.mxu0 0.0
    %1146 = vmatmul.mubr.f32.gmra.mxu0 %v1079
    %v1147 = vpop.f32.mrf.mxu0
    %v1148 = vadd.f32 0.0, %v1147
    %v1149 = vpop.f32.mrf.mxu0
    %1150 = vdwg.mxu0
    %v1151 = vld [vmem:[#allocation2 + $0x8] sm:$0xff]
    %v1152 = vld [vmem:[#allocation2 + $0x10] sm:$0xff]
    %v1153 = vld [vmem:[#allocation2 + $0x28] sm:$0xff]
    %v1154 = vld [vmem:[#allocation2 + $0x30] sm:$0xff]
    %v1155 = vld [vmem:[#allocation2 + $0x48] sm:$0xff]
    %v1156 = vld [vmem:[#allocation2 + $0x50] sm:$0xff]
    %v1157 = vld [vmem:[#allocation2 + $0x68] sm:$0xff]
    %v1158 = vld [vmem:[#allocation2 + $0x70] sm:$0xff]
    %v1159 = vld [vmem:[#allocation2 + $0x88] sm:$0xff]
    %v1160 = vld [vmem:[#allocation2 + $0x90] sm:$0xff]
    %v1161 = vld [vmem:[#allocation2 + $0xa8] sm:$0xff]
    %v1162 = vld [vmem:[#allocation2 + $0xb0] sm:$0xff]
    %v1163 = vld [vmem:[#allocation2 + $0xc8] sm:$0xff]
    %v1164 = vld [vmem:[#allocation2 + $0xd0] sm:$0xff]
    %v1165 = vld [vmem:[#allocation2 + $0xe8] sm:$0xff]
    %v1166 = vld [vmem:[#allocation2 + $0xf0] sm:$0xff]
    %v1167 = vld [vmem:[#allocation2 + $0x108] sm:$0xff]
    %v1168 = vld [vmem:[#allocation2 + $0x110] sm:$0xff]
    %v1169 = vld [vmem:[#allocation2 + $0x128] sm:$0xff]
    %v1170 = vld [vmem:[#allocation2 + $0x130] sm:$0xff]
    %v1171 = vld [vmem:[#allocation2 + $0x148] sm:$0xff]
    %v1172 = vld [vmem:[#allocation2 + $0x150] sm:$0xff]
    %v1173 = vld [vmem:[#allocation2 + $0x168] sm:$0xff]
    %v1174 = vld [vmem:[#allocation2 + $0x170] sm:$0xff]
    %v1175 = vld [vmem:[#allocation2 + $0x188] sm:$0xff]
    %v1176 = vld [vmem:[#allocation2 + $0x190] sm:$0xff]
    %v1177 = vld [vmem:[#allocation2 + $0x1a8] sm:$0xff]
    %v1178 = vld [vmem:[#allocation2 + $0x1b0] sm:$0xff]
    %v1179 = vld [vmem:[#allocation2 + $0x1c8] sm:$0xff]
    %v1180 = vld [vmem:[#allocation2 + $0x1d0] sm:$0xff]
    %v1181 = vld [vmem:[#allocation2 + $0x1e8] sm:$0xff]
    %v1182 = vld [vmem:[#allocation2 + $0x1f0] sm:$0xff]
    %v1184 = vsel %vm299, %v1148, 0
    %1186 = vmatprep.subr.mxu0 0.0
    %1187 = vmatpush1.msra.mxu0 0.0
    %1188 = vmatprep.subr.mxu0 0.0
    %1189 = vmatpush1.msra.mxu0 0.0
    %1190 = vmatprep.subr.mxu0 0.0
    %1191 = vmatpush1.msra.mxu0 0.0
    %1192 = vmatprep.subr.mxu0 0.0
    %1193 = vmatpush1.msra.mxu0 0.0
    %1194 = vmatprep.subr.mxu0 0.0
    %1195 = vmatpush1.msra.mxu0 0.0
    %1196 = vmatprep.subr.mxu0 0.0
    %1197 = vmatpush1.msra.mxu0 0.0
    %1198 = vmatprep.subr.mxu0 0.0
    %1199 = vmatpush1.msra.mxu0 0.0
    %1200 = vmatprep.subr.mxu0 0.0
    %1201 = vmatpush1.msra.mxu0 0.0
    %1202 = vmatprep.subr.mxu0 %v1182
    %1203 = vmatpush1.msra.mxu0 %v1181
    %1204 = vmatprep.subr.mxu0 %v1180
    %1205 = vmatpush1.msra.mxu0 %v1179
    %1206 = vmatprep.subr.mxu0 %v1178
    %1207 = vmatpush1.msra.mxu0 %v1177
    %1208 = vmatprep.subr.mxu0 %v1176
    %1209 = vmatpush1.msra.mxu0 %v1175
    %1210 = vmatprep.subr.mxu0 %v1174
    %1211 = vmatpush1.msra.mxu0 %v1173
    %1212 = vmatprep.subr.mxu0 %v1172
    %1213 = vmatpush1.msra.mxu0 %v1171
    %1214 = vmatprep.subr.mxu0 %v1170
    %1215 = vmatpush1.msra.mxu0 %v1169
    %1216 = vmatprep.subr.mxu0 %v1168
    %1217 = vmatpush1.msra.mxu0 %v1167
    %1218 = vmatprep.subr.mxu0 0.0
    %1219 = vmatpush2.msra.mxu0 0.0
    %1220 = vmatprep.subr.mxu0 0.0
    %1221 = vmatpush2.msra.mxu0 0.0
    %1222 = vmatprep.subr.mxu0 0.0
    %1223 = vmatpush2.msra.mxu0 0.0
    %1224 = vmatprep.subr.mxu0 0.0
    %1225 = vmatpush2.msra.mxu0 0.0
    %1226 = vmatprep.subr.mxu0 0.0
    %1227 = vmatpush2.msra.mxu0 0.0
    %1228 = vmatprep.subr.mxu0 0.0
    %1229 = vmatpush2.msra.mxu0 0.0
    %1230 = vmatprep.subr.mxu0 0.0
    %1231 = vmatpush2.msra.mxu0 0.0
    %1232 = vmatprep.subr.mxu0 0.0
    %1233 = vmatpush2.msra.mxu0 0.0
    %1234 = vmatprep.subr.mxu0 0.0
    %1235 = vmatpush2.msra.mxu0 0.0
    %1236 = vmatprep.subr.mxu0 0.0
    %1237 = vmatpush2.msra.mxu0 0.0
    %1238 = vmatprep.subr.mxu0 0.0
    %1239 = vmatpush2.msra.mxu0 0.0
    %1240 = vmatprep.subr.mxu0 0.0
    %1241 = vmatpush2.msra.mxu0 0.0
    %1242 = vmatprep.subr.mxu0 0.0
    %1243 = vmatpush2.msra.mxu0 0.0
    %1244 = vmatprep.subr.mxu0 0.0
    %1245 = vmatpush2.msra.mxu0 0.0
    %1246 = vmatprep.subr.mxu0 0.0
    %1247 = vmatpush2.msra.mxu0 0.0
    %1248 = vmatprep.subr.mxu0 0.0
    %1249 = vmatpush2.msra.mxu0 0.0
    %1250 = vmatprep.mubr.f32.mxu0 0.0
    %1251 = vmatmul.mubr.f32.gmra.mxu0 %v1184
    %v1252 = vpop.f32.mrf.mxu0
    %v1253 = vadd.f32 0.0, %v1252
    %v1254 = vpop.f32.mrf.mxu0
    %v1255 = vadd.f32 0.0, %v1254
    %1256 = vdwg.mxu0
    %v1258 = vsel %vm299, %v1075, 0
    %1260 = vmatprep.subr.mxu0 0.0
    %1261 = vmatpush1.msra.mxu0 0.0
    %1262 = vmatprep.subr.mxu0 0.0
    %1263 = vmatpush1.msra.mxu0 0.0
    %1264 = vmatprep.subr.mxu0 0.0
    %1265 = vmatpush1.msra.mxu0 0.0
    %1266 = vmatprep.subr.mxu0 0.0
    %1267 = vmatpush1.msra.mxu0 0.0
    %1268 = vmatprep.subr.mxu0 0.0
    %1269 = vmatpush1.msra.mxu0 0.0
    %1270 = vmatprep.subr.mxu0 0.0
    %1271 = vmatpush1.msra.mxu0 0.0
    %1272 = vmatprep.subr.mxu0 0.0
    %1273 = vmatpush1.msra.mxu0 0.0
    %1274 = vmatprep.subr.mxu0 0.0
    %1275 = vmatpush1.msra.mxu0 0.0
    %1276 = vmatprep.subr.mxu0 %v1166
    %1277 = vmatpush1.msra.mxu0 %v1165
    %1278 = vmatprep.subr.mxu0 %v1164
    %1279 = vmatpush1.msra.mxu0 %v1163
    %1280 = vmatprep.subr.mxu0 %v1162
    %1281 = vmatpush1.msra.mxu0 %v1161
    %1282 = vmatprep.subr.mxu0 %v1160
    %1283 = vmatpush1.msra.mxu0 %v1159
    %1284 = vmatprep.subr.mxu0 %v1158
    %1285 = vmatpush1.msra.mxu0 %v1157
    %1286 = vmatprep.subr.mxu0 %v1156
    %1287 = vmatpush1.msra.mxu0 %v1155
    %1288 = vmatprep.subr.mxu0 %v1154
    %1289 = vmatpush1.msra.mxu0 %v1153
    %1290 = vmatprep.subr.mxu0 %v1152
    %1291 = vmatpush1.msra.mxu0 %v1151
    %1292 = vmatprep.subr.mxu0 0.0
    %1293 = vmatpush2.msra.mxu0 0.0
    %1294 = vmatprep.subr.mxu0 0.0
    %1295 = vmatpush2.msra.mxu0 0.0
    %1296 = vmatprep.subr.mxu0 0.0
    %1297 = vmatpush2.msra.mxu0 0.0
    %1298 = vmatprep.subr.mxu0 0.0
    %1299 = vmatpush2.msra.mxu0 0.0
    %1300 = vmatprep.subr.mxu0 0.0
    %1301 = vmatpush2.msra.mxu0 0.0
    %1302 = vmatprep.subr.mxu0 0.0
    %1303 = vmatpush2.msra.mxu0 0.0
    %1304 = vmatprep.subr.mxu0 0.0
    %1305 = vmatpush2.msra.mxu0 0.0
    %1306 = vmatprep.subr.mxu0 0.0
    %1307 = vmatpush2.msra.mxu0 0.0
    %1308 = vmatprep.subr.mxu0 0.0
    %1309 = vmatpush2.msra.mxu0 0.0
    %1310 = vmatprep.subr.mxu0 0.0
    %1311 = vmatpush2.msra.mxu0 0.0
    %1312 = vmatprep.subr.mxu0 0.0
    %1313 = vmatpush2.msra.mxu0 0.0
    %1314 = vmatprep.subr.mxu0 0.0
    %1315 = vmatpush2.msra.mxu0 0.0
    %1316 = vmatprep.subr.mxu0 0.0
    %1317 = vmatpush2.msra.mxu0 0.0
    %1318 = vmatprep.subr.mxu0 0.0
    %1319 = vmatpush2.msra.mxu0 0.0
    %1320 = vmatprep.subr.mxu0 0.0
    %1321 = vmatpush2.msra.mxu0 0.0
    %1322 = vmatprep.subr.mxu0 0.0
    %1323 = vmatpush2.msra.mxu0 0.0
    %1324 = vmatprep.mubr.f32.mxu0 0.0
    %1325 = vmatmul.mubr.f32.gmra.mxu0 %v1258
    %v1326 = vpop.f32.mrf.mxu0
    %v1327 = vadd.f32 %v1253, %v1326
    %v1328 = vpop.f32.mrf.mxu0
    %v1329 = vadd.f32 %v1255, %v1328
    %1330 = vdwg.mxu0
    %s1331 = scalar_lea.vmem %s5, 20
    %v1332 = vld [vmem:[%s1331] ss:$8 sm:$0x3]
    %v1334 = vlaneseq
    %v1335 = vshrl.u32 %v1334, 7
    %v1336 = vsub.s32 0, %v1335
    %v1337 = vrot.slane %v1332, %v1336
    %v1338 = vlaneseq
    %v1339 = vshrl.u32 %v1338, 7
    %v1340 = vsub.s32 1, %v1339
    %v1341 = vrot.slane %v1332, %v1340
    %v1344 = vadd.f32 %v1327, %v1337
    %v1345 = vadd.f32 %v1329, %v1341
    %s1346 = scalar_lea.vmem %s5, 21
    %v1347 = vld [vmem:[%s1346] ss:$8 sm:$0x3]
    %s1348 = scalar_lea.vmem %s5, 22
    %v1349 = vld [vmem:[%s1348] ss:$8 sm:$0x3]
    %vm1350 = vcmask 1041408
    %v1351 = vsel %vm1350, %v1344, 0.0
    %v1352 = vsel %vm1350, %v1345, 0.0
    %v1353 = vadd.f32 %v1351, %v1352
    %1354 = vadd.xlane.f32.xlu0 %v1353
    %v1355 = vpop.xlane.xlu0 %1354
    %v1356 = vrcp.pop 256.0
    %v1357 = vmul.f32 %v1355, %v1356
    %v1358 = vsub.f32 %v1344, %v1357
    %v1359 = vsub.f32 %v1345, %v1357
    %v1360 = vmul.f32 %v1358, %v1358
    %v1361 = vmul.f32 %v1359, %v1359
    %v1362 = vsel %vm1350, %v1360, 0.0
    %v1363 = vsel %vm1350, %v1361, 0.0
    %v1364 = vadd.f32 %v1362, %v1363
    %1365 = vadd.xlane.f32.xlu0 %v1364
    %v1366 = vpop.xlane.xlu0 %1365
    %v1367 = vmul.f32 %v1366, %v1356
    %v1368 = vadd.f32 %v1367, 1e-05
    %v1369 = vrsqrt.pop %v1368
    %v1370 = vmul.f32 %v1358, %v1369
    %v1371 = vmul.f32 %v1359, %v1369
    %v1373 = vlaneseq
    %v1374 = vshrl.u32 %v1373, 7
    %v1375 = vsub.s32 0, %v1374
    %v1376 = vrot.slane %v1347, %v1375
    %v1377 = vlaneseq
    %v1378 = vshrl.u32 %v1377, 7
    %v1379 = vsub.s32 1, %v1378
    %v1380 = vrot.slane %v1347, %v1379
    %v1383 = vmul.f32 %v1370, %v1376
    %v1384 = vmul.f32 %v1371, %v1380
    %v1386 = vlaneseq
    %v1387 = vshrl.u32 %v1386, 7
    %v1388 = vsub.s32 0, %v1387
    %v1389 = vrot.slane %v1349, %v1388
    %v1390 = vlaneseq
    %v1391 = vshrl.u32 %v1390, 7
    %v1392 = vsub.s32 1, %v1391
    %v1393 = vrot.slane %v1349, %v1392
    %v1396 = vadd.f32 %v1383, %v1389
    %v1397 = vadd.f32 %v1384, %v1393
    %v1398 = vmax.f32 %v1396, 0.0
    %v1399 = vmax.f32 %v1397, 0.0
    %v1400 = vld [vmem:[#allocation4] sm:$0xff]
    %v1401 = vld [vmem:[#allocation4 + $0x8] sm:$0xff]
    %v1402 = vld [vmem:[#allocation4 + $0x10] sm:$0xff]
    %v1403 = vld [vmem:[#allocation4 + $0x18] sm:$0xff]
    %v1404 = vld [vmem:[#allocation4 + $0x20] sm:$0xff]
    %v1405 = vld [vmem:[#allocation4 + $0x28] sm:$0xff]
    %v1406 = vld [vmem:[#allocation4 + $0x30] sm:$0xff]
    %v1407 = vld [vmem:[#allocation4 + $0x38] sm:$0xff]
    %v1408 = vld [vmem:[#allocation4 + $0x40] sm:$0xff]
    %v1409 = vld [vmem:[#allocation4 + $0x48] sm:$0xff]
    %v1410 = vld [vmem:[#allocation4 + $0x50] sm:$0xff]
    %v1411 = vld [vmem:[#allocation4 + $0x58] sm:$0xff]
    %v1412 = vld [vmem:[#allocation4 + $0x60] sm:$0xff]
    %v1413 = vld [vmem:[#allocation4 + $0x68] sm:$0xff]
    %v1414 = vld [vmem:[#allocation4 + $0x70] sm:$0xff]
    %v1415 = vld [vmem:[#allocation4 + $0x78] sm:$0xff]
    %v1416 = vld [vmem:[#allocation4 + $0x80] sm:$0xff]
    %v1417 = vld [vmem:[#allocation4 + $0x88] sm:$0xff]
    %v1418 = vld [vmem:[#allocation4 + $0x90] sm:$0xff]
    %v1419 = vld [vmem:[#allocation4 + $0x98] sm:$0xff]
    %v1420 = vld [vmem:[#allocation4 + $0xa0] sm:$0xff]
    %v1421 = vld [vmem:[#allocation4 + $0xa8] sm:$0xff]
    %v1422 = vld [vmem:[#allocation4 + $0xb0] sm:$0xff]
    %v1423 = vld [vmem:[#allocation4 + $0xb8] sm:$0xff]
    %v1424 = vld [vmem:[#allocation4 + $0xc0] sm:$0xff]
    %v1425 = vld [vmem:[#allocation4 + $0xc8] sm:$0xff]
    %v1426 = vld [vmem:[#allocation4 + $0xd0] sm:$0xff]
    %v1427 = vld [vmem:[#allocation4 + $0xd8] sm:$0xff]
    %v1428 = vld [vmem:[#allocation4 + $0xe0] sm:$0xff]
    %v1429 = vld [vmem:[#allocation4 + $0xe8] sm:$0xff]
    %v1430 = vld [vmem:[#allocation4 + $0xf0] sm:$0xff]
    %v1431 = vld [vmem:[#allocation4 + $0xf8] sm:$0xff]
    %v1432 = vld [vmem:[%s5 + $0x17] ss:$0 sm:$0xff]
    %1433 = vmatprep.subr.mxu0 0.0
    %1434 = vmatpush1.msra.mxu0 %v1415
    %1435 = vmatprep.subr.mxu0 0.0
    %1436 = vmatpush1.msra.mxu0 %v1414
    %1437 = vmatprep.subr.mxu0 0.0
    %1438 = vmatpush1.msra.mxu0 %v1413
    %1439 = vmatprep.subr.mxu0 0.0
    %1440 = vmatpush1.msra.mxu0 %v1412
    %1441 = vmatprep.subr.mxu0 0.0
    %1442 = vmatpush1.msra.mxu0 %v1411
    %1443 = vmatprep.subr.mxu0 0.0
    %1444 = vmatpush1.msra.mxu0 %v1410
    %1445 = vmatprep.subr.mxu0 0.0
    %1446 = vmatpush1.msra.mxu0 %v1409
    %1447 = vmatprep.subr.mxu0 0.0
    %1448 = vmatpush1.msra.mxu0 %v1408
    %1449 = vmatprep.subr.mxu0 0.0
    %1450 = vmatpush1.msra.mxu0 %v1407
    %1451 = vmatprep.subr.mxu0 0.0
    %1452 = vmatpush1.msra.mxu0 %v1406
    %1453 = vmatprep.subr.mxu0 0.0
    %1454 = vmatpush1.msra.mxu0 %v1405
    %1455 = vmatprep.subr.mxu0 0.0
    %1456 = vmatpush1.msra.mxu0 %v1404
    %1457 = vmatprep.subr.mxu0 0.0
    %1458 = vmatpush1.msra.mxu0 %v1403
    %1459 = vmatprep.subr.mxu0 0.0
    %1460 = vmatpush1.msra.mxu0 %v1402
    %1461 = vmatprep.subr.mxu0 0.0
    %1462 = vmatpush1.msra.mxu0 %v1401
    %1463 = vmatprep.subr.mxu0 0.0
    %1464 = vmatpush1.msra.mxu0 %v1400
    %1465 = vmatprep.subr.mxu0 0.0
    %1466 = vmatpush2.msra.mxu0 %v1431
    %1467 = vmatprep.subr.mxu0 0.0
    %1468 = vmatpush2.msra.mxu0 %v1430
    %1469 = vmatprep.subr.mxu0 0.0
    %1470 = vmatpush2.msra.mxu0 %v1429
    %1471 = vmatprep.subr.mxu0 0.0
    %1472 = vmatpush2.msra.mxu0 %v1428
    %1473 = vmatprep.subr.mxu0 0.0
    %1474 = vmatpush2.msra.mxu0 %v1427
    %1475 = vmatprep.subr.mxu0 0.0
    %1476 = vmatpush2.msra.mxu0 %v1426
    %1477 = vmatprep.subr.mxu0 0.0
    %1478 = vmatpush2.msra.mxu0 %v1425
    %1479 = vmatprep.subr.mxu0 0.0
    %1480 = vmatpush2.msra.mxu0 %v1424
    %1481 = vmatprep.subr.mxu0 0.0
    %1482 = vmatpush2.msra.mxu0 %v1423
    %1483 = vmatprep.subr.mxu0 0.0
    %1484 = vmatpush2.msra.mxu0 %v1422
    %1485 = vmatprep.subr.mxu0 0.0
    %1486 = vmatpush2.msra.mxu0 %v1421
    %1487 = vmatprep.subr.mxu0 0.0
    %1488 = vmatpush2.msra.mxu0 %v1420
    %1489 = vmatprep.subr.mxu0 0.0
    %1490 = vmatpush2.msra.mxu0 %v1419
    %1491 = vmatprep.subr.mxu0 0.0
    %1492 = vmatpush2.msra.mxu0 %v1418
    %1493 = vmatprep.subr.mxu0 0.0
    %1494 = vmatpush2.msra.mxu0 %v1417
    %1495 = vmatprep.subr.mxu0 0.0
    %1496 = vmatpush2.msra.mxu0 %v1416
    %1497 = vmatprep.mubr.f32.mxu0 %v1399
    %1498 = vmatmul.mubr.f32.gmra.mxu0 %v1398
    %v1499 = vpop.f32.mrf.mxu0
    %v1500 = vadd.f32 %v1432, %v1499
    %v1501 = vpop.f32.mrf.mxu0
    %1502 = vdwg.mxu0
    %v1503 = vld [vmem:[%s5 + $0x20] ss:$0 sm:$0xff]
    %v1504 = vld [vmem:[%s5 + $0x21] ss:$0 sm:$0xff]
    %v1505 = vsel %vm1350, %v1500, 0.0
    %1506 = vadd.xlane.f32.xlu0 %v1505
    %v1507 = vpop.xlane.xlu0 %1506
    %v1508 = vrcp.pop 128.0
    %v1509 = vmul.f32 %v1507, %v1508
    %v1510 = vsub.f32 %v1500, %v1509
    %v1511 = vmul.f32 %v1510, %v1510
    %v1512 = vsel %vm1350, %v1511, 0.0
    %1513 = vadd.xlane.f32.xlu0 %v1512
    %v1514 = vpop.xlane.xlu0 %1513
    %v1515 = vmul.f32 %v1514, %v1508
    %v1516 = vadd.f32 %v1515, 1e-05
    %v1517 = vrsqrt.pop %v1516
    %v1518 = vmul.f32 %v1510, %v1517
    %v1519 = vmul.f32 %v1518, %v1503
    %v1520 = vadd.f32 %v1519, %v1504
    %v1521 = vmax.f32 %v1520, 0.0
    %v1522 = vld [vmem:[#allocation2 + $0x18] sm:$0xff]
    %v1523 = vld [vmem:[#allocation2 + $0x38] sm:$0xff]
    %v1524 = vld [vmem:[#allocation2 + $0x58] sm:$0xff]
    %v1525 = vld [vmem:[#allocation2 + $0x78] sm:$0xff]
    %v1526 = vld [vmem:[#allocation2 + $0x98] sm:$0xff]
    %v1527 = vld [vmem:[#allocation2 + $0xb8] sm:$0xff]
    %v1528 = vld [vmem:[#allocation2 + $0xd8] sm:$0xff]
    %v1529 = vld [vmem:[#allocation2 + $0xf8] sm:$0xff]
    %v1530 = vld [vmem:[#allocation2 + $0x118] sm:$0xff]
    %v1531 = vld [vmem:[#allocation2 + $0x138] sm:$0xff]
    %v1532 = vld [vmem:[#allocation2 + $0x158] sm:$0xff]
    %v1533 = vld [vmem:[#allocation2 + $0x178] sm:$0xff]
    %v1534 = vld [vmem:[#allocation2 + $0x198] sm:$0xff]
    %v1535 = vld [vmem:[#allocation2 + $0x1b8] sm:$0xff]
    %v1536 = vld [vmem:[#allocation2 + $0x1d8] sm:$0xff]
    %v1537 = vld [vmem:[#allocation2 + $0x1f8] sm:$0xff]
    %v1538 = vld [vmem:[%s5 + $0x22] ss:$0 sm:$0xff]
    %1539 = vmatprep.subr.mxu0 0.0
    %1540 = vmatpush1.msra.mxu0 %v1537
    %1541 = vmatprep.subr.mxu0 0.0
    %1542 = vmatpush1.msra.mxu0 %v1536
    %1543 = vmatprep.subr.mxu0 0.0
    %1544 = vmatpush1.msra.mxu0 %v1535
    %1545 = vmatprep.subr.mxu0 0.0
    %1546 = vmatpush1.msra.mxu0 %v1534
    %1547 = vmatprep.subr.mxu0 0.0
    %1548 = vmatpush1.msra.mxu0 %v1533
    %1549 = vmatprep.subr.mxu0 0.0
    %1550 = vmatpush1.msra.mxu0 %v1532
    %1551 = vmatprep.subr.mxu0 0.0
    %1552 = vmatpush1.msra.mxu0 %v1531
    %1553 = vmatprep.subr.mxu0 0.0
    %1554 = vmatpush1.msra.mxu0 %v1530
    %1555 = vmatprep.subr.mxu0 0.0
    %1556 = vmatpush1.msra.mxu0 %v1529
    %1557 = vmatprep.subr.mxu0 0.0
    %1558 = vmatpush1.msra.mxu0 %v1528
    %1559 = vmatprep.subr.mxu0 0.0
    %1560 = vmatpush1.msra.mxu0 %v1527
    %1561 = vmatprep.subr.mxu0 0.0
    %1562 = vmatpush1.msra.mxu0 %v1526
    %1563 = vmatprep.subr.mxu0 0.0
    %1564 = vmatpush1.msra.mxu0 %v1525
    %1565 = vmatprep.subr.mxu0 0.0
    %1566 = vmatpush1.msra.mxu0 %v1524
    %1567 = vmatprep.subr.mxu0 0.0
    %1568 = vmatpush1.msra.mxu0 %v1523
    %1569 = vmatprep.subr.mxu0 0.0
    %1570 = vmatpush1.msra.mxu0 %v1522
    %1571 = vmatprep.subr.mxu0 0.0
    %1572 = vmatpush2.msra.mxu0 0.0
    %1573 = vmatprep.subr.mxu0 0.0
    %1574 = vmatpush2.msra.mxu0 0.0
    %1575 = vmatprep.subr.mxu0 0.0
    %1576 = vmatpush2.msra.mxu0 0.0
    %1577 = vmatprep.subr.mxu0 0.0
    %1578 = vmatpush2.msra.mxu0 0.0
    %1579 = vmatprep.subr.mxu0 0.0
    %1580 = vmatpush2.msra.mxu0 0.0
    %1581 = vmatprep.subr.mxu0 0.0
    %1582 = vmatpush2.msra.mxu0 0.0
    %1583 = vmatprep.subr.mxu0 0.0
    %1584 = vmatpush2.msra.mxu0 0.0
    %1585 = vmatprep.subr.mxu0 0.0
    %1586 = vmatpush2.msra.mxu0 0.0
    %1587 = vmatprep.subr.mxu0 0.0
    %1588 = vmatpush2.msra.mxu0 0.0
    %1589 = vmatprep.subr.mxu0 0.0
    %1590 = vmatpush2.msra.mxu0 0.0
    %1591 = vmatprep.subr.mxu0 0.0
    %1592 = vmatpush2.msra.mxu0 0.0
    %1593 = vmatprep.subr.mxu0 0.0
    %1594 = vmatpush2.msra.mxu0 0.0
    %1595 = vmatprep.subr.mxu0 0.0
    %1596 = vmatpush2.msra.mxu0 0.0
    %1597 = vmatprep.subr.mxu0 0.0
    %1598 = vmatpush2.msra.mxu0 0.0
    %1599 = vmatprep.subr.mxu0 0.0
    %1600 = vmatpush2.msra.mxu0 0.0
    %1601 = vmatprep.subr.mxu0 0.0
    %1602 = vmatpush2.msra.mxu0 0.0
    %1603 = vmatprep.mubr.f32.mxu0 0.0
    %1604 = vmatmul.mubr.f32.gmra.mxu0 %v1521
    %v1605 = vpop.f32.mrf.mxu0
    %v1606 = vadd.f32 %v1538, %v1605
    %v1607 = vpop.f32.mrf.mxu0
    %1608 = vdwg.mxu0
    %v1609 = vtanh.pop %v1606
    %1610 = vst [vmem:[%s6] sm:$0x3] %v1609
    // Predicated region
    $region34: #{model_forward.1} parent=1 // pred_check
      _
    $region35: #{model_forward.1} parent=1 // pred_check_branch
      %1612 = sbr.rel (0) target = $region37
    $region36: #{model_forward.1} parent=1 // pred_region
      _
    $region37: #{model_forward.1} parent=1 // pred_fallthru
      _
    // Predicated region
    $region38: #{model_forward.1} parent=1 // pred_check
      _
    $region39: #{model_forward.1} parent=1 // pred_check_branch
      %1614 = sbr.rel (0) target = $region41
    $region40: #{model_forward.1} parent=1 // pred_region
      _
    $region41: #{model_forward.1} parent=1 // pred_fallthru
      _
    %1615 = vsyncpa [#allocation3], 1
    %1616 = vsyncpa [#allocation5], 1

</llo_original>
